<compile_context>
chip_gen: v7x
topology: tpu7x:2x2x1
jax: 0.10.0
libtpu: 0.0.40
codegen_flags: <defaults>
</compile_context>

<pallas_src>
import jax
import jax.numpy as jnp
from jax.experimental import pallas as pl
from jax.experimental.pallas import tpu as pltpu


def _round_up(x, m):
    return ((x + m - 1) // m) * m


# ----------------------------- Pallas kernel --------------------------------
def _disc_gmm_kernel(k_ref, z_ref,
                     wk1_ref, wz1_ref, b1_ref,
                     w2_ref, b2_ref,
                     w3_ref, b3_ref,
                     w4_ref, b4_ref,
                     o_ref):
    bf16, f32 = jnp.bfloat16, jnp.float32

    def leaky(x):                       # LeakyReLU(0.1): one vmul + vmax
        return jnp.maximum(x, 0.1 * x)

    # Layer 1:  cat([k, z], dim=1) @ W1 + b1  ==  k @ Wk1 + z @ Wz1 + b1
    h = (jnp.dot(k_ref[...].astype(bf16), wk1_ref[...], preferred_element_type=f32)
         + jnp.dot(z_ref[...].astype(bf16), wz1_ref[...], preferred_element_type=f32)
         + b1_ref[...])
    h = leaky(h)

    # Layer 2: 512 -> 512
    h = leaky(jnp.dot(h.astype(bf16), w2_ref[...], preferred_element_type=f32)
              + b2_ref[...])

    # Layer 3: 512 -> 256
    h = leaky(jnp.dot(h.astype(bf16), w3_ref[...], preferred_element_type=f32)
              + b3_ref[...])

    # Layer 4: 256 -> 1 (W4 is N-padded to 128 for the MXU; only column 0 is
    # real).  Transpose on the XLU (slack slot) and store only row 0 as a
    # lane-dense (1, bm) block -> writeback shrinks from bm*128*4 to bm*4 B.
    y = (jnp.dot(h.astype(bf16), w4_ref[...], preferred_element_type=f32)
         + b4_ref[...])                                  # (bm, 128)
    o_ref[...] = y.T[0:1, :]                             # (1, bm)


# ------------------------- one-time parameter prep --------------------------
def prep_params(params, k_size, n_pad=128):
    """Split/pad/cast weights ONCE (hoisted out of the per-call path)."""
    k_pad = max(8, _round_up(k_size, 8))          # 10 -> 16 for k_size=10
    w1 = params["w1"]                              # (k_size + z_size, 512), f32
    wk1 = (jnp.zeros((k_pad, w1.shape[1]), jnp.float32)
           .at[:k_size].set(w1[:k_size])).astype(jnp.bfloat16)
    wz1 = w1[k_size:].astype(jnp.bfloat16)

    w4 = params["w4"]                              # (256, 1)
    w4p = (jnp.zeros((w4.shape[0], n_pad), jnp.float32)
           .at[:, :w4.shape[1]].set(w4)).astype(jnp.bfloat16)
    b4p = jnp.zeros((n_pad,), jnp.float32).at[:w4.shape[1]].set(params["b4"])

    return dict(
        wk1=wk1, wz1=wz1, b1=params["b1"][None, :].astype(jnp.float32),
        w2=params["w2"].astype(jnp.bfloat16), b2=params["b2"][None, :].astype(jnp.float32),
        w3=params["w3"].astype(jnp.bfloat16), b3=params["b3"][None, :].astype(jnp.float32),
        w4=w4p, b4=b4p[None, :],
    )


# ------------------------------- forward ------------------------------------
def discriminator_gmm_forward(k, z, prepped):
    """k: (B, k_size), z: (B, z_size) -> (B, 1) float32."""
    B, k_size = k.shape
    z_size = z.shape[1]
    k_pad = prepped["wk1"].shape[0]

    # Batch tiling:
    #   * B <= 128: single full-dim tile (latency path, no alignment needed).
    #   * B  > 128: multiple-of-128 tile, capped at 512 and chosen so the
    #     parallel grid keeps >= 2 steps (both v7x TensorCores stay busy).
    if B <= 128:
        bm = B
    else:
        bm = min(512, 128 * max(1, (B // 2) // 128))
    grid_m = pl.cdiv(B, bm)
    Bp = grid_m * bm

    # Only k gets a tiny per-call feature pad (zeros in cols 10..15 -> no-op in
    # the matmul).  z streams as-is: no batch-padding copy.  A partial last
    # block yields garbage rows, which map to output columns >= B and are
    # sliced off (safe: every op here is row-independent).
    k_p = jnp.zeros((B, k_pad), jnp.float32).at[:, :k_size].set(k.astype(jnp.float32))

    def act_spec(feat):
        return pl.BlockSpec((bm, feat), lambda i: (i, 0))

    def w_spec(shape):
        # Constant block index -> weight stays VMEM-resident across grid steps.
        return pl.BlockSpec(shape, lambda i: (0,) * len(shape))

    inputs = (k_p, z,
              prepped["wk1"], prepped["wz1"], prepped["b1"],
              prepped["w2"], prepped["b2"],
              prepped["w3"], prepped["b3"],
              prepped["w4"], prepped["b4"])
    in_specs = ([act_spec(k_pad), act_spec(z_size)]
                + [w_spec(x.shape) for x in inputs[2:]])

    out = pl.pallas_call(
        _disc_gmm_kernel,
        out_shape=jax.ShapeDtypeStruct((1, Bp), jnp.float32),
        grid=(grid_m,),
        in_specs=in_specs,
        out_specs=pl.BlockSpec((1, bm), lambda i: (0, i)),
        compiler_params=pltpu.CompilerParams(dimension_semantics=("parallel",)),
    )(*inputs)
    return out[0, :B][:, None]


# ------------------------- parameter setup (glue) ---------------------------
def _spectral_normalize(w_out_in, key, n_power_iterations=1, eps=1e-12):
    """Mimic torch.nn.utils.spectral_norm forward-time weight normalization.
    w_out_in has shape (out_features, in_features) like torch's Linear.weight."""
    # TODO(synk): torch persists the power-iteration vector `u` as a buffer
    # across steps; here it is drawn fresh once at init (single forward).
    out_f, in_f = w_out_in.shape
    u = jax.random.normal(key, (out_f,), jnp.float32)
    u = u / (jnp.linalg.norm(u) + eps)
    v = jnp.zeros((in_f,), jnp.float32)
    for _ in range(n_power_iterations):
        v = w_out_in.T @ u
        v = v / (jnp.linalg.norm(v) + eps)
        u = w_out_in @ v
        u = u / (jnp.linalg.norm(u) + eps)
    sigma = u @ (w_out_in @ v)
    return w_out_in / sigma


def make_params(key, k_size=10, z_size=128):
    dims = [(k_size + z_size, 512), (512, 512), (512, 256), (256, 1)]
    params = {}
    keys = jax.random.split(key, 3 * len(dims))
    for i, (fan_in, fan_out) in enumerate(dims):
        kw, kb, ku = keys[3 * i], keys[3 * i + 1], keys[3 * i + 2]
        bound = 1.0 / jnp.sqrt(fan_in)
        w_out_in = jax.random.uniform(kw, (fan_out, fan_in), jnp.float32, -bound, bound)
        w_out_in = _spectral_normalize(w_out_in, ku)
        b = jax.random.uniform(kb, (fan_out,), jnp.float32, -bound, bound)
        params[f"w{i + 1}"] = w_out_in.T  # store as (in, out)
        params[f"b{i + 1}"] = b
    return params


# ------------------------------ references ----------------------------------
def reference_forward_f32(k, z, params):
    """Pure-f32 reference of the PyTorch forward."""
    x = jnp.concatenate([k, z], axis=1)
    x = jnp.where((h := x @ params["w1"] + params["b1"]) >= 0, h, 0.1 * h)
    x = jnp.where((h := x @ params["w2"] + params["b2"]) >= 0, h, 0.1 * h)
    x = jnp.where((h := x @ params["w3"] + params["b3"]) >= 0, h, 0.1 * h)
    return x @ params["w4"] + params["b4"]


def reference_forward_bf16(k, z, params):
    """Reference emulating the kernel's numerics (bf16 matmul inputs, f32 acc).
    Intentional numeric drift vs the f32 PyTorch module (bf16 weights)."""
    bf16, f32 = jnp.bfloat16, jnp.float32

    def dotb(a, w):
        return jnp.dot(a.astype(bf16), w.astype(bf16), preferred_element_type=f32)

    x = jnp.concatenate([k, z], axis=1)
    x = jnp.maximum(h := dotb(x, params["w1"]) + params["b1"], 0.1 * h)
    x = jnp.maximum(h := dotb(x, params["w2"]) + params["b2"], 0.1 * h)
    x = jnp.maximum(h := dotb(x, params["w3"]) + params["b3"], 0.1 * h)
    return dotb(x, params["w4"]) + params["b4"]


# --------------------------------- main --------------------------------------
if __name__ == "__main__":
    k_size, z_size = 10, 128
    root = jax.random.PRNGKey(0)
    kp, kk1, kz1, kk2, kz2 = jax.random.split(root, 5)

    params = make_params(kp, k_size, z_size)
    prepped = jax.tree_util.tree_map(jax.block_until_ready, prep_params(params, k_size))

    fwd = jax.jit(discriminator_gmm_forward)

    # Small / latency case: B = 8 -> single grid step, (1, 8) lane output.
    B1 = 8
    k1 = jax.random.normal(kk1, (B1, k_size), jnp.float32)
    z1 = jax.random.normal(kz1, (B1, z_size), jnp.float32)
    out1 = jax.block_until_ready(fwd(k1, z1, prepped))
    assert out1.shape == (B1, 1)
    assert jnp.allclose(out1, reference_forward_bf16(k1, z1, params),
                        atol=2e-2, rtol=2e-2), "B=8 mismatch vs bf16 reference"
    assert jnp.allclose(out1, reference_forward_f32(k1, z1, params),
                        atol=2e-1, rtol=2e-1), "B=8 mismatch vs f32 reference"

    # Larger batch: bm=128, 3 parallel grid steps, partial last block (no
    # batch-padding copies of z), transposed lane-dense scalar output.
    B2 = 300
    k2 = jax.random.normal(kk2, (B2, k_size), jnp.float32)
    z2 = jax.random.normal(kz2, (B2, z_size), jnp.float32)
    out2 = jax.block_until_ready(fwd(k2, z2, prepped))
    assert out2.shape == (B2, 1)
    assert jnp.allclose(out2, reference_forward_bf16(k2, z2, params),
                        atol=2e-2, rtol=2e-2), "B=300 mismatch vs bf16 reference"
    assert jnp.allclose(out2, reference_forward_f32(k2, z2, params),
                        atol=2e-1, rtol=2e-1), "B=300 mismatch vs f32 reference"

    print("KERNEL_OK")
</pallas_src>

<mosaic_0001>
module attributes {stable_mosaic.version = 11 : i64} {
  func.func @_disc_gmm_kernel(%arg0: i32, %arg1: memref<8x16xf32, #tpu.memory_space<vmem>>, %arg2: memref<8x128xf32, #tpu.memory_space<vmem>>, %arg3: memref<16x512xbf16, #tpu.memory_space<vmem>>, %arg4: memref<128x512xbf16, #tpu.memory_space<vmem>>, %arg5: memref<1x512xf32, #tpu.memory_space<vmem>>, %arg6: memref<512x512xbf16, #tpu.memory_space<vmem>>, %arg7: memref<1x512xf32, #tpu.memory_space<vmem>>, %arg8: memref<512x256xbf16, #tpu.memory_space<vmem>>, %arg9: memref<1x256xf32, #tpu.memory_space<vmem>>, %arg10: memref<256x128xbf16, #tpu.memory_space<vmem>>, %arg11: memref<1x128xf32, #tpu.memory_space<vmem>>, %arg12: memref<1x8xf32, #tpu.memory_space<vmem>>) attributes {dimension_semantics = [#tpu.dimension_semantics<parallel>], iteration_bounds = array<i64: 1>, scalar_prefetch = 0 : i64, scratch_operands = 0 : i64, tpu.core_type = #tpu.core_type<tc>, window_params = [{transform_indices = @transform_0, window_bounds = array<i64: 8, 16>}, {transform_indices = @transform_1, window_bounds = array<i64: 8, 128>}, {pipeline_mode = #tpu.pipeline_mode<synchronous>, transform_indices = @transform_2, window_bounds = array<i64: 16, 512>}, {pipeline_mode = #tpu.pipeline_mode<synchronous>, transform_indices = @transform_3, window_bounds = array<i64: 128, 512>}, {pipeline_mode = #tpu.pipeline_mode<synchronous>, transform_indices = @transform_4, window_bounds = array<i64: 1, 512>}, {pipeline_mode = #tpu.pipeline_mode<synchronous>, transform_indices = @transform_5, window_bounds = array<i64: 512, 512>}, {pipeline_mode = #tpu.pipeline_mode<synchronous>, transform_indices = @transform_6, window_bounds = array<i64: 1, 512>}, {pipeline_mode = #tpu.pipeline_mode<synchronous>, transform_indices = @transform_7, window_bounds = array<i64: 512, 256>}, {pipeline_mode = #tpu.pipeline_mode<synchronous>, transform_indices = @transform_8, window_bounds = array<i64: 1, 256>}, {pipeline_mode = #tpu.pipeline_mode<synchronous>, transform_indices = @transform_9, window_bounds = array<i64: 256, 128>}, {pipeline_mode = #tpu.pipeline_mode<synchronous>, transform_indices = @transform_10, window_bounds = array<i64: 1, 128>}, {transform_indices = @transform_11, window_bounds = array<i64: 1, 8>}]} {
    %c0 = arith.constant 0 : index
    %c0_0 = arith.constant 0 : index
    %0 = vector.load %arg1[%c0, %c0_0] : memref<8x16xf32, #tpu.memory_space<vmem>>, vector<8x16xf32>
    %1 = arith.truncf %0 : vector<8x16xf32> to vector<8x16xbf16>
    %c0_1 = arith.constant 0 : index
    %c0_2 = arith.constant 0 : index
    %2 = vector.load %arg3[%c0_1, %c0_2] : memref<16x512xbf16, #tpu.memory_space<vmem>>, vector<16x512xbf16>
    %cst = arith.constant dense<0.000000e+00> : vector<8x512xf32>
    %3 = tpu.matmul %1, %2, %cst {dimension_numbers = #tpu.dot_dimension_numbers<[1], [0], [0], [1], [0, 0, 1, 1], [], []>} : vector<8x16xbf16>, vector<16x512xbf16>, vector<8x512xf32> -> vector<8x512xf32>
    %c0_3 = arith.constant 0 : index
    %c0_4 = arith.constant 0 : index
    %4 = vector.load %arg2[%c0_3, %c0_4] : memref<8x128xf32, #tpu.memory_space<vmem>>, vector<8x128xf32>
    %5 = arith.truncf %4 : vector<8x128xf32> to vector<8x128xbf16>
    %c0_5 = arith.constant 0 : index
    %c0_6 = arith.constant 0 : index
    %6 = vector.load %arg4[%c0_5, %c0_6] : memref<128x512xbf16, #tpu.memory_space<vmem>>, vector<128x512xbf16>
    %cst_7 = arith.constant dense<0.000000e+00> : vector<8x512xf32>
    %7 = tpu.matmul %5, %6, %cst_7 {dimension_numbers = #tpu.dot_dimension_numbers<[1], [0], [0], [1], [0, 0, 1, 1], [], []>} : vector<8x128xbf16>, vector<128x512xbf16>, vector<8x512xf32> -> vector<8x512xf32>
    %8 = arith.addf %3, %7 : vector<8x512xf32>
    %c0_8 = arith.constant 0 : index
    %c0_9 = arith.constant 0 : index
    %9 = vector.load %arg5[%c0_8, %c0_9] : memref<1x512xf32, #tpu.memory_space<vmem>>, vector<1x512xf32>
    %10 = vector.broadcast %9 : vector<1x512xf32> to vector<8x512xf32>
    %11 = arith.addf %8, %10 : vector<8x512xf32>
    %cst_10 = arith.constant 1.000000e-01 : f32
    %12 = vector.broadcast %cst_10 : f32 to vector<8x512xf32>
    %13 = arith.mulf %12, %11 : vector<8x512xf32>
    %14 = arith.maximumf %11, %13 : vector<8x512xf32>
    %15 = arith.truncf %14 : vector<8x512xf32> to vector<8x512xbf16>
    %c0_11 = arith.constant 0 : index
    %c0_12 = arith.constant 0 : index
    %16 = vector.load %arg6[%c0_11, %c0_12] : memref<512x512xbf16, #tpu.memory_space<vmem>>, vector<512x512xbf16>
    %cst_13 = arith.constant dense<0.000000e+00> : vector<8x512xf32>
    %17 = tpu.matmul %15, %16, %cst_13 {dimension_numbers = #tpu.dot_dimension_numbers<[1], [0], [0], [1], [0, 0, 1, 1], [], []>} : vector<8x512xbf16>, vector<512x512xbf16>, vector<8x512xf32> -> vector<8x512xf32>
    %c0_14 = arith.constant 0 : index
    %c0_15 = arith.constant 0 : index
    %18 = vector.load %arg7[%c0_14, %c0_15] : memref<1x512xf32, #tpu.memory_space<vmem>>, vector<1x512xf32>
    %19 = vector.broadcast %18 : vector<1x512xf32> to vector<8x512xf32>
    %20 = arith.addf %17, %19 : vector<8x512xf32>
    %cst_16 = arith.constant 1.000000e-01 : f32
    %21 = vector.broadcast %cst_16 : f32 to vector<8x512xf32>
    %22 = arith.mulf %21, %20 : vector<8x512xf32>
    %23 = arith.maximumf %20, %22 : vector<8x512xf32>
    %24 = arith.truncf %23 : vector<8x512xf32> to vector<8x512xbf16>
    %c0_17 = arith.constant 0 : index
    %c0_18 = arith.constant 0 : index
    %25 = vector.load %arg8[%c0_17, %c0_18] : memref<512x256xbf16, #tpu.memory_space<vmem>>, vector<512x256xbf16>
    %cst_19 = arith.constant dense<0.000000e+00> : vector<8x256xf32>
    %26 = tpu.matmul %24, %25, %cst_19 {dimension_numbers = #tpu.dot_dimension_numbers<[1], [0], [0], [1], [0, 0, 1, 1], [], []>} : vector<8x512xbf16>, vector<512x256xbf16>, vector<8x256xf32> -> vector<8x256xf32>
    %c0_20 = arith.constant 0 : index
    %c0_21 = arith.constant 0 : index
    %27 = vector.load %arg9[%c0_20, %c0_21] : memref<1x256xf32, #tpu.memory_space<vmem>>, vector<1x256xf32>
    %28 = vector.broadcast %27 : vector<1x256xf32> to vector<8x256xf32>
    %29 = arith.addf %26, %28 : vector<8x256xf32>
    %cst_22 = arith.constant 1.000000e-01 : f32
    %30 = vector.broadcast %cst_22 : f32 to vector<8x256xf32>
    %31 = arith.mulf %30, %29 : vector<8x256xf32>
    %32 = arith.maximumf %29, %31 : vector<8x256xf32>
    %33 = arith.truncf %32 : vector<8x256xf32> to vector<8x256xbf16>
    %c0_23 = arith.constant 0 : index
    %c0_24 = arith.constant 0 : index
    %34 = vector.load %arg10[%c0_23, %c0_24] : memref<256x128xbf16, #tpu.memory_space<vmem>>, vector<256x128xbf16>
    %cst_25 = arith.constant dense<0.000000e+00> : vector<8x128xf32>
    %35 = tpu.matmul %33, %34, %cst_25 {dimension_numbers = #tpu.dot_dimension_numbers<[1], [0], [0], [1], [0, 0, 1, 1], [], []>} : vector<8x256xbf16>, vector<256x128xbf16>, vector<8x128xf32> -> vector<8x128xf32>
    %c0_26 = arith.constant 0 : index
    %c0_27 = arith.constant 0 : index
    %36 = vector.load %arg11[%c0_26, %c0_27] : memref<1x128xf32, #tpu.memory_space<vmem>>, vector<1x128xf32>
    %37 = vector.broadcast %36 : vector<1x128xf32> to vector<8x128xf32>
    %38 = arith.addf %35, %37 : vector<8x128xf32>
    %39 = tpu.transpose %38, [1, 0] : vector<8x128xf32> -> vector<128x8xf32>
    %40 = vector.extract_strided_slice %39 {offsets = [0, 0], sizes = [1, 8], strides = [1, 1]} : vector<128x8xf32> to vector<1x8xf32>
    %c0_28 = arith.constant 0 : index
    %c0_29 = arith.constant 0 : index
    %41 = vector.load %arg12[%c0_28, %c0_29] : memref<1x8xf32, #tpu.memory_space<vmem>>, vector<1x8xf32>
    tpu.vector_store %arg12[%c0_28, %c0_29], %40 {strides = array<i32>} : memref<1x8xf32, #tpu.memory_space<vmem>>, vector<1x8xf32>,
    return
  }
  func.func @transform_0(%arg0: i32) -> (i32, i32) {
    %c0_i32 = arith.constant 0 : i32
    %c0_i32_0 = arith.constant 0 : i32
    return %arg0, %c0_i32 : i32, i32
  }
  func.func @transform_1(%arg0: i32) -> (i32, i32) {
    %c0_i32 = arith.constant 0 : i32
    %c0_i32_0 = arith.constant 0 : i32
    return %arg0, %c0_i32 : i32, i32
  }
  func.func @transform_2(%arg0: i32) -> (i32, i32) {
    %c0_i32 = arith.constant 0 : i32
    %c0_i32_0 = arith.constant 0 : i32
    %c0_i32_1 = arith.constant 0 : i32
    return %c0_i32, %c0_i32_0 : i32, i32
  }
  func.func @transform_3(%arg0: i32) -> (i32, i32) {
    %c0_i32 = arith.constant 0 : i32
    %c0_i32_0 = arith.constant 0 : i32
    %c0_i32_1 = arith.constant 0 : i32
    return %c0_i32, %c0_i32_0 : i32, i32
  }
  func.func @transform_4(%arg0: i32) -> (i32, i32) {
    %c0_i32 = arith.constant 0 : i32
    %c0_i32_0 = arith.constant 0 : i32
    %c0_i32_1 = arith.constant 0 : i32
    return %c0_i32, %c0_i32_0 : i32, i32
  }
  func.func @transform_5(%arg0: i32) -> (i32, i32) {
    %c0_i32 = arith.constant 0 : i32
    %c0_i32_0 = arith.constant 0 : i32
    %c0_i32_1 = arith.constant 0 : i32
    return %c0_i32, %c0_i32_0 : i32, i32
  }
  func.func @transform_6(%arg0: i32) -> (i32, i32) {
    %c0_i32 = arith.constant 0 : i32
    %c0_i32_0 = arith.constant 0 : i32
    %c0_i32_1 = arith.constant 0 : i32
    return %c0_i32, %c0_i32_0 : i32, i32
  }
  func.func @transform_7(%arg0: i32) -> (i32, i32) {
    %c0_i32 = arith.constant 0 : i32
    %c0_i32_0 = arith.constant 0 : i32
    %c0_i32_1 = arith.constant 0 : i32
    return %c0_i32, %c0_i32_0 : i32, i32
  }
  func.func @transform_8(%arg0: i32) -> (i32, i32) {
    %c0_i32 = arith.constant 0 : i32
    %c0_i32_0 = arith.constant 0 : i32
    %c0_i32_1 = arith.constant 0 : i32
    return %c0_i32, %c0_i32_0 : i32, i32
  }
  func.func @transform_9(%arg0: i32) -> (i32, i32) {
    %c0_i32 = arith.constant 0 : i32
    %c0_i32_0 = arith.constant 0 : i32
    %c0_i32_1 = arith.constant 0 : i32
    return %c0_i32, %c0_i32_0 : i32, i32
  }
  func.func @transform_10(%arg0: i32) -> (i32, i32) {
    %c0_i32 = arith.constant 0 : i32
    %c0_i32_0 = arith.constant 0 : i32
    %c0_i32_1 = arith.constant 0 : i32
    return %c0_i32, %c0_i32_0 : i32, i32
  }
  func.func @transform_11(%arg0: i32) -> (i32, i32) {
    %c0_i32 = arith.constant 0 : i32
    %c0_i32_0 = arith.constant 0 : i32
    return %c0_i32, %arg0 : i32, i32
  }
}

</mosaic_0001>

<llo_original>
// kernel: discriminator_gmm_forward.1
$region0: #{discriminator_gmm_forward.1}
  #allocation0 [shape = 'u32[]', space=smem, size = 0x4, offset = 0x4, fixed_abs, tag = 'smem constant byte address 0x4 - core index']
  #allocation1 [shape = 'u32[144,128]{1,0:T(1,128)}', space=vmem, size = 0x12000, scoped, tag = 'internal scratch']
  %s0 = inlined_call_operand.vmem [shape: f32[8,16], index: 0, kind: input, shape index: {}]
  %s1 = inlined_call_operand.vmem [shape: f32[8,128], index: 1, kind: input, shape index: {}]
  %s2 = inlined_call_operand.vmem [shape: bf16[16,512], index: 2, kind: input, shape index: {}]
  %s3 = inlined_call_operand.hbm [shape: bf16[128,512], index: 3, kind: input, shape index: {}]
  %s4 = inlined_call_operand.vmem [shape: f32[1,512], index: 4, kind: input, shape index: {}]
  %s5 = inlined_call_operand.hbm [shape: bf16[512,512], index: 5, kind: input, shape index: {}]
  %s6 = inlined_call_operand.vmem [shape: f32[1,512], index: 6, kind: input, shape index: {}]
  %s7 = inlined_call_operand.hbm [shape: bf16[512,256], index: 7, kind: input, shape index: {}]
  %s8 = inlined_call_operand.vmem [shape: f32[1,256], index: 8, kind: input, shape index: {}]
  %s9 = inlined_call_operand.hbm [shape: bf16[256,128], index: 9, kind: input, shape index: {}]
  %s10 = inlined_call_operand.vmem [shape: f32[1,128], index: 10, kind: input, shape index: {}]
  %s11 = inlined_call_operand.hbm [shape: f32[1,8], index: 11, kind: output, shape index: {}]
  %s12 = sld [smem:[#allocation0]]
  $region70: #{discriminator_gmm_forward.1} parent=0
    _
  %s14 = ssub.s32 1, %s12
  %s15 = scalar_select 0, %s14, %s12
  $region1: #{discriminator_gmm_forward.1} parent=0
    #allocation2 [shape = 'u8[131072]{0}', space=vmem, size = 0x20000, scoped, tag = 'input window, operand 3, single buffered']
    #allocation3 [shape = 's32[1]{0}', space=sflag, size = 0x4, scoped, tag = 'scoped memory for discriminator_gmm_forward.1']
    #allocation4 [shape = 's32[1]{0}', space=sflag, size = 0x4, scoped, tag = 'scoped memory for discriminator_gmm_forward.1']
    #allocation5 [shape = 'u8[524288]{0}', space=vmem, size = 0x80000, scoped, tag = 'input window, operand 5, single buffered']
    #allocation6 [shape = 's32[1]{0}', space=sflag, size = 0x4, scoped, tag = 'scoped memory for discriminator_gmm_forward.1']
    #allocation7 [shape = 'u8[262144]{0}', space=vmem, size = 0x40000, scoped, tag = 'input window, operand 7, single buffered']
    #allocation8 [shape = 'u8[65536]{0}', space=vmem, size = 0x10000, scoped, tag = 'input window, operand 9, single buffered']
    #allocation9 [shape = 's32[1]{0}', space=sflag, size = 0x4, scoped, tag = 'scoped memory for discriminator_gmm_forward.1']
    #allocation10 [shape = 'u8[512]{0}', space=vmem, size = 0x400, scoped, tag = 'output window, operand 0, single buffered']
    %16 = vsyncpa [#allocation3], 0
    %17 = vsyncpa [#allocation6], 0
    %18 = vsyncpa [#allocation9], 0
    %19 = vsyncpa [#allocation4], 0
    // Predicated region
    $region2: #{discriminator_gmm_forward.1} parent=1 // pred_check
      _
    $region3: #{discriminator_gmm_forward.1} parent=1 // pred_check_branch
      %21 = sbr.rel (0) target = $region5
    $region4: #{discriminator_gmm_forward.1} parent=1 // pred_region
      _
    $region5: #{discriminator_gmm_forward.1} parent=1 // pred_fallthru
      _
    // Predicated region
    $region6: #{discriminator_gmm_forward.1} parent=1 // pred_check
      _
    $region7: #{discriminator_gmm_forward.1} parent=1 // pred_check_branch
      %23 = sbr.rel (0) target = $region9
    $region8: #{discriminator_gmm_forward.1} parent=1 // pred_region
      _
    $region9: #{discriminator_gmm_forward.1} parent=1 // pred_fallthru
      _
    // Predicated region
    $region10: #{discriminator_gmm_forward.1} parent=1 // pred_check
      _
    $region11: #{discriminator_gmm_forward.1} parent=1 // pred_check_branch
      %25 = sbr.rel (0) target = $region13
    $region12: #{discriminator_gmm_forward.1} parent=1 // pred_region
      _
    $region13: #{discriminator_gmm_forward.1} parent=1 // pred_fallthru
      _
    // Predicated region
    $region14: #{discriminator_gmm_forward.1} parent=1 // pred_check
      _
    $region15: #{discriminator_gmm_forward.1} parent=1 // pred_check_branch
      %27 = sbr.rel (0) target = $region17
    $region16: #{discriminator_gmm_forward.1} parent=1 // pred_region
      %s29 = ssub.s32 4096, 4096
      %30 = vsyncadd [#allocation3], %s29
      %s31 = sshll.u32 [#allocation2], 4
      %s32 = int_to_ptr.vmem [resolvable:$true] %s31
      %37 = dma.hbm_to_vmem [thread:$0]  %s3, 4096, %s32, [#allocation3], 256, 256, 16
    $region17: #{discriminator_gmm_forward.1} parent=1 // pred_fallthru
      _
    // Predicated region
    $region18: #{discriminator_gmm_forward.1} parent=1 // pred_check
      _
    $region19: #{discriminator_gmm_forward.1} parent=1 // pred_check_branch
      %39 = sbr.rel (0) target = $region21
    $region20: #{discriminator_gmm_forward.1} parent=1 // pred_region
      _
    $region21: #{discriminator_gmm_forward.1} parent=1 // pred_fallthru
      _
    // Predicated region
    $region22: #{discriminator_gmm_forward.1} parent=1 // pred_check
      _
    $region23: #{discriminator_gmm_forward.1} parent=1 // pred_check_branch
      %41 = sbr.rel (0) target = $region25
    $region24: #{discriminator_gmm_forward.1} parent=1 // pred_region
      %s43 = ssub.s32 16384, 16384
      %44 = vsyncadd [#allocation6], %s43
      %s45 = sshll.u32 [#allocation5], 4
      %s46 = int_to_ptr.vmem [resolvable:$true] %s45
      %51 = dma.hbm_to_vmem [thread:$0]  %s5, 16384, %s46, [#allocation6], 256, 256, 16
    $region25: #{discriminator_gmm_forward.1} parent=1 // pred_fallthru
      _
    // Predicated region
    $region26: #{discriminator_gmm_forward.1} parent=1 // pred_check
      _
    $region27: #{discriminator_gmm_forward.1} parent=1 // pred_check_branch
      %53 = sbr.rel (0) target = $region29
    $region28: #{discriminator_gmm_forward.1} parent=1 // pred_region
      _
    $region29: #{discriminator_gmm_forward.1} parent=1 // pred_fallthru
      _
    // Predicated region
    $region30: #{discriminator_gmm_forward.1} parent=1 // pred_check
      _
    $region31: #{discriminator_gmm_forward.1} parent=1 // pred_check_branch
      %55 = sbr.rel (0) target = $region33
    $region32: #{discriminator_gmm_forward.1} parent=1 // pred_region
      %s57 = ssub.s32 8192, 8192
      %58 = vsyncadd [#allocation6], %s57
      %s59 = sshll.u32 [#allocation7], 4
      %s60 = int_to_ptr.vmem [resolvable:$true] %s59
      %65 = dma.hbm_to_vmem [thread:$0]  %s7, 8192, %s60, [#allocation6], 128, 128, 8
    $region33: #{discriminator_gmm_forward.1} parent=1 // pred_fallthru
      _
    // Predicated region
    $region34: #{discriminator_gmm_forward.1} parent=1 // pred_check
      _
    $region35: #{discriminator_gmm_forward.1} parent=1 // pred_check_branch
      %67 = sbr.rel (0) target = $region37
    $region36: #{discriminator_gmm_forward.1} parent=1 // pred_region
      _
    $region37: #{discriminator_gmm_forward.1} parent=1 // pred_fallthru
      _
    // Predicated region
    $region38: #{discriminator_gmm_forward.1} parent=1 // pred_check
      _
    $region39: #{discriminator_gmm_forward.1} parent=1 // pred_check_branch
      %69 = sbr.rel (0) target = $region41
    $region40: #{discriminator_gmm_forward.1} parent=1 // pred_region
      %s71 = ssub.s32 2048, 2048
      %72 = vsyncadd [#allocation9], %s71
      %s73 = sshll.u32 [#allocation8], 4
      %s74 = int_to_ptr.vmem [resolvable:$true] %s73
      %79 = dma.hbm_to_vmem [thread:$0]  %s9, 2048, %s74, [#allocation9], 64, 64, 4
    $region41: #{discriminator_gmm_forward.1} parent=1 // pred_fallthru
      _
    // Predicated region
    $region42: #{discriminator_gmm_forward.1} parent=1 // pred_check
      _
    $region43: #{discriminator_gmm_forward.1} parent=1 // pred_check_branch
      %81 = sbr.rel (0) target = $region45
    $region44: #{discriminator_gmm_forward.1} parent=1 // pred_region
      _
    $region45: #{discriminator_gmm_forward.1} parent=1 // pred_fallthru
      _
    // Predicated region
    $region46: #{discriminator_gmm_forward.1} parent=1 // pred_check
      _
    $region47: #{discriminator_gmm_forward.1} parent=1 // pred_check_branch
      %83 = sbr.rel (0) target = $region49
    $region48: #{discriminator_gmm_forward.1} parent=1 // pred_region
      %84 = dma.done [#allocation3], 4096
    $region49: #{discriminator_gmm_forward.1} parent=1 // pred_fallthru
      _
    // Predicated region
    $region50: #{discriminator_gmm_forward.1} parent=1 // pred_check
      _
    $region51: #{discriminator_gmm_forward.1} parent=1 // pred_check_branch
      %86 = sbr.rel (0) target = $region53
    $region52: #{discriminator_gmm_forward.1} parent=1 // pred_region
      %87 = dma.done [#allocation6], 16384
    $region53: #{discriminator_gmm_forward.1} parent=1 // pred_fallthru
      _
    // Predicated region
    $region54: #{discriminator_gmm_forward.1} parent=1 // pred_check
      _
    $region55: #{discriminator_gmm_forward.1} parent=1 // pred_check_branch
      %89 = sbr.rel (0) target = $region57
    $region56: #{discriminator_gmm_forward.1} parent=1 // pred_region
      %90 = dma.done [#allocation6], 8192
    $region57: #{discriminator_gmm_forward.1} parent=1 // pred_fallthru
      _
    // Predicated region
    $region58: #{discriminator_gmm_forward.1} parent=1 // pred_check
      _
    $region59: #{discriminator_gmm_forward.1} parent=1 // pred_check_branch
      %92 = sbr.rel (0) target = $region61
    $region60: #{discriminator_gmm_forward.1} parent=1 // pred_region
      %93 = dma.done [#allocation9], 2048
    $region61: #{discriminator_gmm_forward.1} parent=1 // pred_fallthru
      _
    %v95 = vld [vmem:[%s0] sm:$0xff]
    %v96 = vpack.c.bf16 %v95, %v95
    %v97 = vld [vmem:[%s2] sm:$0xff]
    %v98 = vld [vmem:[%s2 + $0x8] sm:$0xff]
    %v99 = vld [vmem:[%s2 + $0x10] sm:$0xff]
    %v100 = vld [vmem:[%s2 + $0x18] sm:$0xff]
    %v101 = vld [vmem:[%s1] sm:$0xff]
    %v102 = vpack.c.bf16 %v101, %v101
    %v103 = vld [vmem:[#allocation2] sm:$0xff]
    %v104 = vld [vmem:[#allocation2 + $0x8] sm:$0xff]
    %v105 = vld [vmem:[#allocation2 + $0x10] sm:$0xff]
    %v106 = vld [vmem:[#allocation2 + $0x18] sm:$0xff]
    %v107 = vld [vmem:[#allocation2 + $0x20] sm:$0xff]
    %v108 = vld [vmem:[#allocation2 + $0x28] sm:$0xff]
    %v109 = vld [vmem:[#allocation2 + $0x30] sm:$0xff]
    %v110 = vld [vmem:[#allocation2 + $0x38] sm:$0xff]
    %v111 = vld [vmem:[#allocation2 + $0x40] sm:$0xff]
    %v112 = vld [vmem:[#allocation2 + $0x48] sm:$0xff]
    %v113 = vld [vmem:[#allocation2 + $0x50] sm:$0xff]
    %v114 = vld [vmem:[#allocation2 + $0x58] sm:$0xff]
    %v115 = vld [vmem:[#allocation2 + $0x60] sm:$0xff]
    %v116 = vld [vmem:[#allocation2 + $0x68] sm:$0xff]
    %v117 = vld [vmem:[#allocation2 + $0x70] sm:$0xff]
    %v118 = vld [vmem:[#allocation2 + $0x78] sm:$0xff]
    %v119 = vld [vmem:[#allocation2 + $0x80] sm:$0xff]
    %v120 = vld [vmem:[#allocation2 + $0x88] sm:$0xff]
    %v121 = vld [vmem:[#allocation2 + $0x90] sm:$0xff]
    %v122 = vld [vmem:[#allocation2 + $0x98] sm:$0xff]
    %v123 = vld [vmem:[#allocation2 + $0xa0] sm:$0xff]
    %v124 = vld [vmem:[#allocation2 + $0xa8] sm:$0xff]
    %v125 = vld [vmem:[#allocation2 + $0xb0] sm:$0xff]
    %v126 = vld [vmem:[#allocation2 + $0xb8] sm:$0xff]
    %v127 = vld [vmem:[#allocation2 + $0xc0] sm:$0xff]
    %v128 = vld [vmem:[#allocation2 + $0xc8] sm:$0xff]
    %v129 = vld [vmem:[#allocation2 + $0xd0] sm:$0xff]
    %v130 = vld [vmem:[#allocation2 + $0xd8] sm:$0xff]
    %v131 = vld [vmem:[#allocation2 + $0xe0] sm:$0xff]
    %v132 = vld [vmem:[#allocation2 + $0xe8] sm:$0xff]
    %v133 = vld [vmem:[#allocation2 + $0xf0] sm:$0xff]
    %v134 = vld [vmem:[#allocation2 + $0xf8] sm:$0xff]
    %v167 = vunpack.c.l.b16 %v103
    %v168 = vunpack.c.h.b16 %v103
    %v169 = vunpack.c.l.b16 %v104
    %v170 = vunpack.c.h.b16 %v104
    %v171 = vunpack.c.l.b16 %v105
    %v172 = vunpack.c.h.b16 %v105
    %v173 = vunpack.c.l.b16 %v106
    %v174 = vunpack.c.h.b16 %v106
    %v175 = vunpack.c.l.b16 %v107
    %v176 = vunpack.c.h.b16 %v107
    %v177 = vunpack.c.l.b16 %v108
    %v178 = vunpack.c.h.b16 %v108
    %v179 = vunpack.c.l.b16 %v109
    %v180 = vunpack.c.h.b16 %v109
    %v181 = vunpack.c.l.b16 %v110
    %v182 = vunpack.c.h.b16 %v110
    %v183 = vunpack.c.l.b16 %v111
    %v184 = vunpack.c.h.b16 %v111
    %v185 = vunpack.c.l.b16 %v112
    %v186 = vunpack.c.h.b16 %v112
    %v187 = vunpack.c.l.b16 %v113
    %v188 = vunpack.c.h.b16 %v113
    %v189 = vunpack.c.l.b16 %v114
    %v190 = vunpack.c.h.b16 %v114
    %v191 = vunpack.c.l.b16 %v115
    %v192 = vunpack.c.h.b16 %v115
    %v193 = vunpack.c.l.b16 %v116
    %v194 = vunpack.c.h.b16 %v116
    %v195 = vunpack.c.l.b16 %v117
    %v196 = vunpack.c.h.b16 %v117
    %v197 = vunpack.c.l.b16 %v118
    %v198 = vunpack.c.h.b16 %v118
    %v199 = vunpack.c.l.b16 %v119
    %v200 = vunpack.c.h.b16 %v119
    %v201 = vunpack.c.l.b16 %v120
    %v202 = vunpack.c.h.b16 %v120
    %v203 = vunpack.c.l.b16 %v121
    %v204 = vunpack.c.h.b16 %v121
    %v205 = vunpack.c.l.b16 %v122
    %v206 = vunpack.c.h.b16 %v122
    %v207 = vunpack.c.l.b16 %v123
    %v208 = vunpack.c.h.b16 %v123
    %v209 = vunpack.c.l.b16 %v124
    %v210 = vunpack.c.h.b16 %v124
    %v211 = vunpack.c.l.b16 %v125
    %v212 = vunpack.c.h.b16 %v125
    %v213 = vunpack.c.l.b16 %v126
    %v214 = vunpack.c.h.b16 %v126
    %v215 = vunpack.c.l.b16 %v127
    %v216 = vunpack.c.h.b16 %v127
    %v217 = vunpack.c.l.b16 %v128
    %v218 = vunpack.c.h.b16 %v128
    %v219 = vunpack.c.l.b16 %v129
    %v220 = vunpack.c.h.b16 %v129
    %v221 = vunpack.c.l.b16 %v130
    %v222 = vunpack.c.h.b16 %v130
    %v223 = vunpack.c.l.b16 %v131
    %v224 = vunpack.c.h.b16 %v131
    %v225 = vunpack.c.l.b16 %v132
    %v226 = vunpack.c.h.b16 %v132
    %v227 = vunpack.c.l.b16 %v133
    %v228 = vunpack.c.h.b16 %v133
    %v229 = vunpack.c.l.b16 %v134
    %v230 = vunpack.c.h.b16 %v134
    %v231 = vpack.c.b16 %v171, %v167
    %v232 = vpack.c.b16 %v172, %v168
    %v233 = vpack.c.b16 %v173, %v169
    %v234 = vpack.c.b16 %v174, %v170
    %v235 = vpack.c.b16 %v179, %v175
    %v236 = vpack.c.b16 %v180, %v176
    %v237 = vpack.c.b16 %v181, %v177
    %v238 = vpack.c.b16 %v182, %v178
    %v239 = vpack.c.b16 %v187, %v183
    %v240 = vpack.c.b16 %v188, %v184
    %v241 = vpack.c.b16 %v189, %v185
    %v242 = vpack.c.b16 %v190, %v186
    %v243 = vpack.c.b16 %v195, %v191
    %v244 = vpack.c.b16 %v196, %v192
    %v245 = vpack.c.b16 %v197, %v193
    %v246 = vpack.c.b16 %v198, %v194
    %v247 = vpack.c.b16 %v203, %v199
    %v248 = vpack.c.b16 %v204, %v200
    %v249 = vpack.c.b16 %v205, %v201
    %v250 = vpack.c.b16 %v206, %v202
    %v251 = vpack.c.b16 %v211, %v207
    %v252 = vpack.c.b16 %v212, %v208
    %v253 = vpack.c.b16 %v213, %v209
    %v254 = vpack.c.b16 %v214, %v210
    %v255 = vpack.c.b16 %v219, %v215
    %v256 = vpack.c.b16 %v220, %v216
    %v257 = vpack.c.b16 %v221, %v217
    %v258 = vpack.c.b16 %v222, %v218
    %v259 = vpack.c.b16 %v227, %v223
    %v260 = vpack.c.b16 %v228, %v224
    %v261 = vpack.c.b16 %v229, %v225
    %v262 = vpack.c.b16 %v230, %v226
    %295 = vmatprep.subr.bf16.mxu0 %v232
    %296 = vmatpush1.bf16.msra.mxu0 %v231
    %297 = vmatprep.subr.bf16.mxu0 %v236
    %298 = vmatpush1.bf16.msra.mxu0 %v235
    %299 = vmatprep.subr.bf16.mxu0 %v240
    %300 = vmatpush1.bf16.msra.mxu0 %v239
    %301 = vmatprep.subr.bf16.mxu0 %v244
    %302 = vmatpush1.bf16.msra.mxu0 %v243
    %303 = vmatprep.subr.bf16.mxu0 %v248
    %304 = vmatpush1.bf16.msra.mxu0 %v247
    %305 = vmatprep.subr.bf16.mxu0 %v252
    %306 = vmatpush1.bf16.msra.mxu0 %v251
    %307 = vmatprep.subr.bf16.mxu0 %v256
    %308 = vmatpush1.bf16.msra.mxu0 %v255
    %309 = vmatprep.subr.bf16.mxu0 %v260
    %310 = vmatpush1.bf16.msra.mxu0 %v259
    %311 = vmatprep.subr.bf16.mxu0 0
    %312 = vmatpush1.bf16.msra.mxu0 0
    %313 = vmatprep.subr.bf16.mxu0 0
    %314 = vmatpush1.bf16.msra.mxu0 0
    %315 = vmatprep.subr.bf16.mxu0 0
    %316 = vmatpush1.bf16.msra.mxu0 0
    %317 = vmatprep.subr.bf16.mxu0 0
    %318 = vmatpush1.bf16.msra.mxu0 0
    %319 = vmatprep.subr.bf16.mxu0 0
    %320 = vmatpush1.bf16.msra.mxu0 0
    %321 = vmatprep.subr.bf16.mxu0 0
    %322 = vmatpush1.bf16.msra.mxu0 0
    %323 = vmatprep.subr.bf16.mxu0 0
    %324 = vmatpush1.bf16.msra.mxu0 0
    %325 = vmatprep.subr.bf16.mxu0 0
    %326 = vmatpush1.bf16.msra.mxu0 0
    %327 = vmatprep.mubr.bf16.mxu0 0
    %328 = vmatmul.mubr.bf16.gmra.mrb[0].mxu0 %v102
    %v329 = vpop.f32.mrb[0].mxu0
    %v330 = vadd.f32 0.0, %v329
    %v331 = vpop.f32.mrb[0].mxu0
    %v332 = vadd.f32 0.0, %v331
    %v333 = vpop.f32.mrb[0].mxu0
    %v334 = vpop.f32.mrb[0].mxu0
    %335 = vdwg.mxu0
    %336 = vmatprep.subr.bf16.mxu0 %v234
    %337 = vmatpush1.bf16.msra.mxu0 %v233
    %338 = vmatprep.subr.bf16.mxu0 %v238
    %339 = vmatpush1.bf16.msra.mxu0 %v237
    %340 = vmatprep.subr.bf16.mxu0 %v242
    %341 = vmatpush1.bf16.msra.mxu0 %v241
    %342 = vmatprep.subr.bf16.mxu0 %v246
    %343 = vmatpush1.bf16.msra.mxu0 %v245
    %344 = vmatprep.subr.bf16.mxu0 %v250
    %345 = vmatpush1.bf16.msra.mxu0 %v249
    %346 = vmatprep.subr.bf16.mxu0 %v254
    %347 = vmatpush1.bf16.msra.mxu0 %v253
    %348 = vmatprep.subr.bf16.mxu0 %v258
    %349 = vmatpush1.bf16.msra.mxu0 %v257
    %350 = vmatprep.subr.bf16.mxu0 %v262
    %351 = vmatpush1.bf16.msra.mxu0 %v261
    %352 = vmatprep.subr.bf16.mxu0 0
    %353 = vmatpush1.bf16.msra.mxu0 0
    %354 = vmatprep.subr.bf16.mxu0 0
    %355 = vmatpush1.bf16.msra.mxu0 0
    %356 = vmatprep.subr.bf16.mxu0 0
    %357 = vmatpush1.bf16.msra.mxu0 0
    %358 = vmatprep.subr.bf16.mxu0 0
    %359 = vmatpush1.bf16.msra.mxu0 0
    %360 = vmatprep.subr.bf16.mxu0 0
    %361 = vmatpush1.bf16.msra.mxu0 0
    %362 = vmatprep.subr.bf16.mxu0 0
    %363 = vmatpush1.bf16.msra.mxu0 0
    %364 = vmatprep.subr.bf16.mxu0 0
    %365 = vmatpush1.bf16.msra.mxu0 0
    %366 = vmatprep.subr.bf16.mxu0 0
    %367 = vmatpush1.bf16.msra.mxu0 0
    %368 = vmatprep.mubr.bf16.mxu0 0
    %369 = vmatmul.mubr.bf16.gmra.mrb[0].mxu0 %v102
    %v370 = vpop.f32.mrb[0].mxu0
    %v371 = vadd.f32 0.0, %v370
    %v372 = vpop.f32.mrb[0].mxu0
    %v373 = vadd.f32 0.0, %v372
    %v374 = vpop.f32.mrb[0].mxu0
    %v375 = vpop.f32.mrb[0].mxu0
    %376 = vdwg.mxu0
    %v381 = vunpack.c.l.b16 %v97
    %v382 = vunpack.c.h.b16 %v97
    %v383 = vunpack.c.l.b16 %v98
    %v384 = vunpack.c.h.b16 %v98
    %v385 = vunpack.c.l.b16 %v99
    %v386 = vunpack.c.h.b16 %v99
    %v387 = vunpack.c.l.b16 %v100
    %v388 = vunpack.c.h.b16 %v100
    %v389 = vpack.c.b16 %v385, %v381
    %v390 = vpack.c.b16 %v386, %v382
    %v391 = vpack.c.b16 %v387, %v383
    %v392 = vpack.c.b16 %v388, %v384
    %vm397 = vcmask 130048
    %v399 = vsel %vm397, %v96, 0
    %401 = vmatprep.subr.bf16.mxu0 %v390
    %402 = vmatpush1.bf16.msra.mxu0 %v389
    %403 = vmatprep.subr.bf16.mxu0 0
    %404 = vmatpush1.bf16.msra.mxu0 0
    %405 = vmatprep.subr.bf16.mxu0 0
    %406 = vmatpush1.bf16.msra.mxu0 0
    %407 = vmatprep.subr.bf16.mxu0 0
    %408 = vmatpush1.bf16.msra.mxu0 0
    %409 = vmatprep.subr.bf16.mxu0 0
    %410 = vmatpush1.bf16.msra.mxu0 0
    %411 = vmatprep.subr.bf16.mxu0 0
    %412 = vmatpush1.bf16.msra.mxu0 0
    %413 = vmatprep.subr.bf16.mxu0 0
    %414 = vmatpush1.bf16.msra.mxu0 0
    %415 = vmatprep.subr.bf16.mxu0 0
    %416 = vmatpush1.bf16.msra.mxu0 0
    %417 = vmatprep.subr.bf16.mxu0 0
    %418 = vmatpush1.bf16.msra.mxu0 0
    %419 = vmatprep.subr.bf16.mxu0 0
    %420 = vmatpush1.bf16.msra.mxu0 0
    %421 = vmatprep.subr.bf16.mxu0 0
    %422 = vmatpush1.bf16.msra.mxu0 0
    %423 = vmatprep.subr.bf16.mxu0 0
    %424 = vmatpush1.bf16.msra.mxu0 0
    %425 = vmatprep.subr.bf16.mxu0 0
    %426 = vmatpush1.bf16.msra.mxu0 0
    %427 = vmatprep.subr.bf16.mxu0 0
    %428 = vmatpush1.bf16.msra.mxu0 0
    %429 = vmatprep.subr.bf16.mxu0 0
    %430 = vmatpush1.bf16.msra.mxu0 0
    %431 = vmatprep.subr.bf16.mxu0 0
    %432 = vmatpush1.bf16.msra.mxu0 0
    %433 = vmatprep.mubr.bf16.mxu0 0
    %434 = vmatmul.mubr.bf16.gmra.mrb[0].mxu0 %v399
    %v435 = vpop.f32.mrb[0].mxu0
    %v436 = vadd.f32 %v330, %v435
    %v437 = vpop.f32.mrb[0].mxu0
    %v438 = vadd.f32 %v332, %v437
    %v439 = vpop.f32.mrb[0].mxu0
    %v440 = vpop.f32.mrb[0].mxu0
    %441 = vdwg.mxu0
    %442 = vmatprep.subr.bf16.mxu0 %v392
    %443 = vmatpush1.bf16.msra.mxu0 %v391
    %444 = vmatprep.subr.bf16.mxu0 0
    %445 = vmatpush1.bf16.msra.mxu0 0
    %446 = vmatprep.subr.bf16.mxu0 0
    %447 = vmatpush1.bf16.msra.mxu0 0
    %448 = vmatprep.subr.bf16.mxu0 0
    %449 = vmatpush1.bf16.msra.mxu0 0
    %450 = vmatprep.subr.bf16.mxu0 0
    %451 = vmatpush1.bf16.msra.mxu0 0
    %452 = vmatprep.subr.bf16.mxu0 0
    %453 = vmatpush1.bf16.msra.mxu0 0
    %454 = vmatprep.subr.bf16.mxu0 0
    %455 = vmatpush1.bf16.msra.mxu0 0
    %456 = vmatprep.subr.bf16.mxu0 0
    %457 = vmatpush1.bf16.msra.mxu0 0
    %458 = vmatprep.subr.bf16.mxu0 0
    %459 = vmatpush1.bf16.msra.mxu0 0
    %460 = vmatprep.subr.bf16.mxu0 0
    %461 = vmatpush1.bf16.msra.mxu0 0
    %462 = vmatprep.subr.bf16.mxu0 0
    %463 = vmatpush1.bf16.msra.mxu0 0
    %464 = vmatprep.subr.bf16.mxu0 0
    %465 = vmatpush1.bf16.msra.mxu0 0
    %466 = vmatprep.subr.bf16.mxu0 0
    %467 = vmatpush1.bf16.msra.mxu0 0
    %468 = vmatprep.subr.bf16.mxu0 0
    %469 = vmatpush1.bf16.msra.mxu0 0
    %470 = vmatprep.subr.bf16.mxu0 0
    %471 = vmatpush1.bf16.msra.mxu0 0
    %472 = vmatprep.subr.bf16.mxu0 0
    %473 = vmatpush1.bf16.msra.mxu0 0
    %474 = vmatprep.mubr.bf16.mxu0 0
    %475 = vmatmul.mubr.bf16.gmra.mrb[0].mxu0 %v399
    %v476 = vpop.f32.mrb[0].mxu0
    %v477 = vadd.f32 %v371, %v476
    %v478 = vpop.f32.mrb[0].mxu0
    %v479 = vadd.f32 %v373, %v478
    %v480 = vpop.f32.mrb[0].mxu0
    %v481 = vpop.f32.mrb[0].mxu0
    %482 = vdwg.mxu0
    %v483 = vld [vmem:[%s4] sm:$0xf]
    %v485 = vlaneseq
    %v486 = vshrl.u32 %v485, 7
    %v487 = vsub.s32 0, %v486
    %v488 = vrot.slane %v483, %v487
    %v489 = vlaneseq
    %v490 = vshrl.u32 %v489, 7
    %v491 = vsub.s32 1, %v490
    %v492 = vrot.slane %v483, %v491
    %v493 = vlaneseq
    %v494 = vshrl.u32 %v493, 7
    %v495 = vsub.s32 2, %v494
    %v496 = vrot.slane %v483, %v495
    %v497 = vlaneseq
    %v498 = vshrl.u32 %v497, 7
    %v499 = vsub.s32 3, %v498
    %v500 = vrot.slane %v483, %v499
    %v505 = vadd.f32 %v436, %v488
    %v506 = vadd.f32 %v438, %v492
    %v507 = vadd.f32 %v477, %v496
    %v508 = vadd.f32 %v479, %v500
    %v509 = vmul.f32 %v505, 0.1
    %v510 = vmul.f32 %v506, 0.1
    %v511 = vmul.f32 %v507, 0.1
    %v512 = vmul.f32 %v508, 0.1
    %v513 = vmax.f32 %v505, %v509
    %v514 = vmax.f32 %v506, %v510
    %v515 = vmax.f32 %v507, %v511
    %v516 = vmax.f32 %v508, %v512
    %v517 = vpack.c.bf16 %v513, %v513
    %v518 = vpack.c.bf16 %v514, %v514
    %v519 = vpack.c.bf16 %v515, %v515
    %v520 = vpack.c.bf16 %v516, %v516
    %v521 = vld [vmem:[#allocation5] sm:$0xff]
    %v522 = vld [vmem:[#allocation5 + $0x8] sm:$0xff]
    %v523 = vld [vmem:[#allocation5 + $0x10] sm:$0xff]
    %v524 = vld [vmem:[#allocation5 + $0x18] sm:$0xff]
    %v525 = vld [vmem:[#allocation5 + $0x20] sm:$0xff]
    %v526 = vld [vmem:[#allocation5 + $0x28] sm:$0xff]
    %v527 = vld [vmem:[#allocation5 + $0x30] sm:$0xff]
    %v528 = vld [vmem:[#allocation5 + $0x38] sm:$0xff]
    %v529 = vld [vmem:[#allocation5 + $0x40] sm:$0xff]
    %v530 = vld [vmem:[#allocation5 + $0x48] sm:$0xff]
    %v531 = vld [vmem:[#allocation5 + $0x50] sm:$0xff]
    %v532 = vld [vmem:[#allocation5 + $0x58] sm:$0xff]
    %v533 = vld [vmem:[#allocation5 + $0x60] sm:$0xff]
    %v534 = vld [vmem:[#allocation5 + $0x68] sm:$0xff]
    %v535 = vld [vmem:[#allocation5 + $0x70] sm:$0xff]
    %v536 = vld [vmem:[#allocation5 + $0x78] sm:$0xff]
    %v537 = vld [vmem:[#allocation5 + $0x80] sm:$0xff]
    %v538 = vld [vmem:[#allocation5 + $0x88] sm:$0xff]
    %v539 = vld [vmem:[#allocation5 + $0x90] sm:$0xff]
    %v540 = vld [vmem:[#allocation5 + $0x98] sm:$0xff]
    %v541 = vld [vmem:[#allocation5 + $0xa0] sm:$0xff]
    %v542 = vld [vmem:[#allocation5 + $0xa8] sm:$0xff]
    %v543 = vld [vmem:[#allocation5 + $0xb0] sm:$0xff]
    %v544 = vld [vmem:[#allocation5 + $0xb8] sm:$0xff]
    %v545 = vld [vmem:[#allocation5 + $0xc0] sm:$0xff]
    %v546 = vld [vmem:[#allocation5 + $0xc8] sm:$0xff]
    %v547 = vld [vmem:[#allocation5 + $0xd0] sm:$0xff]
    %v548 = vld [vmem:[#allocation5 + $0xd8] sm:$0xff]
    %v549 = vld [vmem:[#allocation5 + $0xe0] sm:$0xff]
    %v550 = vld [vmem:[#allocation5 + $0xe8] sm:$0xff]
    %v551 = vld [vmem:[#allocation5 + $0xf0] sm:$0xff]
    %v552 = vld [vmem:[#allocation5 + $0xf8] sm:$0xff]
    %v553 = vld [vmem:[#allocation5 + $0x100] sm:$0xff]
    %v554 = vld [vmem:[#allocation5 + $0x108] sm:$0xff]
    %v555 = vld [vmem:[#allocation5 + $0x110] sm:$0xff]
    %v556 = vld [vmem:[#allocation5 + $0x118] sm:$0xff]
    %v557 = vld [vmem:[#allocation5 + $0x120] sm:$0xff]
    %v558 = vld [vmem:[#allocation5 + $0x128] sm:$0xff]
    %v559 = vld [vmem:[#allocation5 + $0x130] sm:$0xff]
    %v560 = vld [vmem:[#allocation5 + $0x138] sm:$0xff]
    %v561 = vld [vmem:[#allocation5 + $0x140] sm:$0xff]
    %v562 = vld [vmem:[#allocation5 + $0x148] sm:$0xff]
    %v563 = vld [vmem:[#allocation5 + $0x150] sm:$0xff]
    %v564 = vld [vmem:[#allocation5 + $0x158] sm:$0xff]
    %v565 = vld [vmem:[#allocation5 + $0x160] sm:$0xff]
    %v566 = vld [vmem:[#allocation5 + $0x168] sm:$0xff]
    %v567 = vld [vmem:[#allocation5 + $0x170] sm:$0xff]
    %v568 = vld [vmem:[#allocation5 + $0x178] sm:$0xff]
    %v569 = vld [vmem:[#allocation5 + $0x180] sm:$0xff]
    %v570 = vld [vmem:[#allocation5 + $0x188] sm:$0xff]
    %v571 = vld [vmem:[#allocation5 + $0x190] sm:$0xff]
    %v572 = vld [vmem:[#allocation5 + $0x198] sm:$0xff]
    %v573 = vld [vmem:[#allocation5 + $0x1a0] sm:$0xff]
    %v574 = vld [vmem:[#allocation5 + $0x1a8] sm:$0xff]
    %v575 = vld [vmem:[#allocation5 + $0x1b0] sm:$0xff]
    %v576 = vld [vmem:[#allocation5 + $0x1b8] sm:$0xff]
    %v577 = vld [vmem:[#allocation5 + $0x1c0] sm:$0xff]
    %v578 = vld [vmem:[#allocation5 + $0x1c8] sm:$0xff]
    %v579 = vld [vmem:[#allocation5 + $0x1d0] sm:$0xff]
    %v580 = vld [vmem:[#allocation5 + $0x1d8] sm:$0xff]
    %v581 = vld [vmem:[#allocation5 + $0x1e0] sm:$0xff]
    %v582 = vld [vmem:[#allocation5 + $0x1e8] sm:$0xff]
    %v583 = vld [vmem:[#allocation5 + $0x1f0] sm:$0xff]
    %v584 = vld [vmem:[#allocation5 + $0x1f8] sm:$0xff]
    %v585 = vld [vmem:[#allocation5 + $0x200] sm:$0xff]
    %v586 = vld [vmem:[#allocation5 + $0x208] sm:$0xff]
    %v587 = vld [vmem:[#allocation5 + $0x210] sm:$0xff]
    %v588 = vld [vmem:[#allocation5 + $0x218] sm:$0xff]
    %v589 = vld [vmem:[#allocation5 + $0x220] sm:$0xff]
    %v590 = vld [vmem:[#allocation5 + $0x228] sm:$0xff]
    %v591 = vld [vmem:[#allocation5 + $0x230] sm:$0xff]
    %v592 = vld [vmem:[#allocation5 + $0x238] sm:$0xff]
    %v593 = vld [vmem:[#allocation5 + $0x240] sm:$0xff]
    %v594 = vld [vmem:[#allocation5 + $0x248] sm:$0xff]
    %v595 = vld [vmem:[#allocation5 + $0x250] sm:$0xff]
    %v596 = vld [vmem:[#allocation5 + $0x258] sm:$0xff]
    %v597 = vld [vmem:[#allocation5 + $0x260] sm:$0xff]
    %v598 = vld [vmem:[#allocation5 + $0x268] sm:$0xff]
    %v599 = vld [vmem:[#allocation5 + $0x270] sm:$0xff]
    %v600 = vld [vmem:[#allocation5 + $0x278] sm:$0xff]
    %v601 = vld [vmem:[#allocation5 + $0x280] sm:$0xff]
    %v602 = vld [vmem:[#allocation5 + $0x288] sm:$0xff]
    %v603 = vld [vmem:[#allocation5 + $0x290] sm:$0xff]
    %v604 = vld [vmem:[#allocation5 + $0x298] sm:$0xff]
    %v605 = vld [vmem:[#allocation5 + $0x2a0] sm:$0xff]
    %v606 = vld [vmem:[#allocation5 + $0x2a8] sm:$0xff]
    %v607 = vld [vmem:[#allocation5 + $0x2b0] sm:$0xff]
    %v608 = vld [vmem:[#allocation5 + $0x2b8] sm:$0xff]
    %v609 = vld [vmem:[#allocation5 + $0x2c0] sm:$0xff]
    %v610 = vld [vmem:[#allocation5 + $0x2c8] sm:$0xff]
    %v611 = vld [vmem:[#allocation5 + $0x2d0] sm:$0xff]
    %v612 = vld [vmem:[#allocation5 + $0x2d8] sm:$0xff]
    %v613 = vld [vmem:[#allocation5 + $0x2e0] sm:$0xff]
    %v614 = vld [vmem:[#allocation5 + $0x2e8] sm:$0xff]
    %v615 = vld [vmem:[#allocation5 + $0x2f0] sm:$0xff]
    %v616 = vld [vmem:[#allocation5 + $0x2f8] sm:$0xff]
    %v617 = vld [vmem:[#allocation5 + $0x300] sm:$0xff]
    %v618 = vld [vmem:[#allocation5 + $0x308] sm:$0xff]
    %v619 = vld [vmem:[#allocation5 + $0x310] sm:$0xff]
    %v620 = vld [vmem:[#allocation5 + $0x318] sm:$0xff]
    %v621 = vld [vmem:[#allocation5 + $0x320] sm:$0xff]
    %v622 = vld [vmem:[#allocation5 + $0x328] sm:$0xff]
    %v623 = vld [vmem:[#allocation5 + $0x330] sm:$0xff]
    %v624 = vld [vmem:[#allocation5 + $0x338] sm:$0xff]
    %v625 = vld [vmem:[#allocation5 + $0x340] sm:$0xff]
    %v626 = vld [vmem:[#allocation5 + $0x348] sm:$0xff]
    %v627 = vld [vmem:[#allocation5 + $0x350] sm:$0xff]
    %v628 = vld [vmem:[#allocation5 + $0x358] sm:$0xff]
    %v629 = vld [vmem:[#allocation5 + $0x360] sm:$0xff]
    %v630 = vld [vmem:[#allocation5 + $0x368] sm:$0xff]
    %v631 = vld [vmem:[#allocation5 + $0x370] sm:$0xff]
    %v632 = vld [vmem:[#allocation5 + $0x378] sm:$0xff]
    %v633 = vld [vmem:[#allocation5 + $0x380] sm:$0xff]
    %v634 = vld [vmem:[#allocation5 + $0x388] sm:$0xff]
    %v635 = vld [vmem:[#allocation5 + $0x390] sm:$0xff]
    %v636 = vld [vmem:[#allocation5 + $0x398] sm:$0xff]
    %v637 = vld [vmem:[#allocation5 + $0x3a0] sm:$0xff]
    %v638 = vld [vmem:[#allocation5 + $0x3a8] sm:$0xff]
    %v639 = vld [vmem:[#allocation5 + $0x3b0] sm:$0xff]
    %v640 = vld [vmem:[#allocation5 + $0x3b8] sm:$0xff]
    %v641 = vld [vmem:[#allocation5 + $0x3c0] sm:$0xff]
    %v642 = vld [vmem:[#allocation5 + $0x3c8] sm:$0xff]
    %v643 = vld [vmem:[#allocation5 + $0x3d0] sm:$0xff]
    %v644 = vld [vmem:[#allocation5 + $0x3d8] sm:$0xff]
    %v645 = vld [vmem:[#allocation5 + $0x3e0] sm:$0xff]
    %v646 = vld [vmem:[#allocation5 + $0x3e8] sm:$0xff]
    %v647 = vld [vmem:[#allocation5 + $0x3f0] sm:$0xff]
    %v648 = vld [vmem:[#allocation5 + $0x3f8] sm:$0xff]
    %v649 = vld [vmem:[%s6] sm:$0xf]
    %v651 = vlaneseq
    %v652 = vshrl.u32 %v651, 7
    %v653 = vsub.s32 0, %v652
    %v654 = vrot.slane %v649, %v653
    %v655 = vlaneseq
    %v656 = vshrl.u32 %v655, 7
    %v657 = vsub.s32 1, %v656
    %v658 = vrot.slane %v649, %v657
    %v659 = vlaneseq
    %v660 = vshrl.u32 %v659, 7
    %v661 = vsub.s32 2, %v660
    %v662 = vrot.slane %v649, %v661
    %v663 = vlaneseq
    %v664 = vshrl.u32 %v663, 7
    %v665 = vsub.s32 3, %v664
    %v666 = vrot.slane %v649, %v665
    %v799 = vunpack.c.l.b16 %v521
    %v800 = vunpack.c.h.b16 %v521
    %v801 = vunpack.c.l.b16 %v522
    %v802 = vunpack.c.h.b16 %v522
    %v803 = vunpack.c.l.b16 %v523
    %v804 = vunpack.c.h.b16 %v523
    %v805 = vunpack.c.l.b16 %v524
    %v806 = vunpack.c.h.b16 %v524
    %v807 = vunpack.c.l.b16 %v525
    %v808 = vunpack.c.h.b16 %v525
    %v809 = vunpack.c.l.b16 %v526
    %v810 = vunpack.c.h.b16 %v526
    %v811 = vunpack.c.l.b16 %v527
    %v812 = vunpack.c.h.b16 %v527
    %v813 = vunpack.c.l.b16 %v528
    %v814 = vunpack.c.h.b16 %v528
    %v815 = vunpack.c.l.b16 %v529
    %v816 = vunpack.c.h.b16 %v529
    %v817 = vunpack.c.l.b16 %v530
    %v818 = vunpack.c.h.b16 %v530
    %v819 = vunpack.c.l.b16 %v531
    %v820 = vunpack.c.h.b16 %v531
    %v821 = vunpack.c.l.b16 %v532
    %v822 = vunpack.c.h.b16 %v532
    %v823 = vunpack.c.l.b16 %v533
    %v824 = vunpack.c.h.b16 %v533
    %v825 = vunpack.c.l.b16 %v534
    %v826 = vunpack.c.h.b16 %v534
    %v827 = vunpack.c.l.b16 %v535
    %v828 = vunpack.c.h.b16 %v535
    %v829 = vunpack.c.l.b16 %v536
    %v830 = vunpack.c.h.b16 %v536
    %v831 = vunpack.c.l.b16 %v537
    %v832 = vunpack.c.h.b16 %v537
    %v833 = vunpack.c.l.b16 %v538
    %v834 = vunpack.c.h.b16 %v538
    %v835 = vunpack.c.l.b16 %v539
    %v836 = vunpack.c.h.b16 %v539
    %v837 = vunpack.c.l.b16 %v540
    %v838 = vunpack.c.h.b16 %v540
    %v839 = vunpack.c.l.b16 %v541
    %v840 = vunpack.c.h.b16 %v541
    %v841 = vunpack.c.l.b16 %v542
    %v842 = vunpack.c.h.b16 %v542
    %v843 = vunpack.c.l.b16 %v543
    %v844 = vunpack.c.h.b16 %v543
    %v845 = vunpack.c.l.b16 %v544
    %v846 = vunpack.c.h.b16 %v544
    %v847 = vunpack.c.l.b16 %v545
    %v848 = vunpack.c.h.b16 %v545
    %v849 = vunpack.c.l.b16 %v546
    %v850 = vunpack.c.h.b16 %v546
    %v851 = vunpack.c.l.b16 %v547
    %v852 = vunpack.c.h.b16 %v547
    %v853 = vunpack.c.l.b16 %v548
    %v854 = vunpack.c.h.b16 %v548
    %v855 = vunpack.c.l.b16 %v549
    %v856 = vunpack.c.h.b16 %v549
    %v857 = vunpack.c.l.b16 %v550
    %v858 = vunpack.c.h.b16 %v550
    %v859 = vunpack.c.l.b16 %v551
    %v860 = vunpack.c.h.b16 %v551
    %v861 = vunpack.c.l.b16 %v552
    %v862 = vunpack.c.h.b16 %v552
    %v863 = vunpack.c.l.b16 %v553
    %v864 = vunpack.c.h.b16 %v553
    %v865 = vunpack.c.l.b16 %v554
    %v866 = vunpack.c.h.b16 %v554
    %v867 = vunpack.c.l.b16 %v555
    %v868 = vunpack.c.h.b16 %v555
    %v869 = vunpack.c.l.b16 %v556
    %v870 = vunpack.c.h.b16 %v556
    %v871 = vunpack.c.l.b16 %v557
    %v872 = vunpack.c.h.b16 %v557
    %v873 = vunpack.c.l.b16 %v558
    %v874 = vunpack.c.h.b16 %v558
    %v875 = vunpack.c.l.b16 %v559
    %v876 = vunpack.c.h.b16 %v559
    %v877 = vunpack.c.l.b16 %v560
    %v878 = vunpack.c.h.b16 %v560
    %v879 = vunpack.c.l.b16 %v561
    %v880 = vunpack.c.h.b16 %v561
    %v881 = vunpack.c.l.b16 %v562
    %v882 = vunpack.c.h.b16 %v562
    %v883 = vunpack.c.l.b16 %v563
    %v884 = vunpack.c.h.b16 %v563
    %v885 = vunpack.c.l.b16 %v564
    %v886 = vunpack.c.h.b16 %v564
    %v887 = vunpack.c.l.b16 %v565
    %v888 = vunpack.c.h.b16 %v565
    %v889 = vunpack.c.l.b16 %v566
    %v890 = vunpack.c.h.b16 %v566
    %v891 = vunpack.c.l.b16 %v567
    %v892 = vunpack.c.h.b16 %v567
    %v893 = vunpack.c.l.b16 %v568
    %v894 = vunpack.c.h.b16 %v568
    %v895 = vunpack.c.l.b16 %v569
    %v896 = vunpack.c.h.b16 %v569
    %v897 = vunpack.c.l.b16 %v570
    %v898 = vunpack.c.h.b16 %v570
    %v899 = vunpack.c.l.b16 %v571
    %v900 = vunpack.c.h.b16 %v571
    %v901 = vunpack.c.l.b16 %v572
    %v902 = vunpack.c.h.b16 %v572
    %v903 = vunpack.c.l.b16 %v573
    %v904 = vunpack.c.h.b16 %v573
    %v905 = vunpack.c.l.b16 %v574
    %v906 = vunpack.c.h.b16 %v574
    %v907 = vunpack.c.l.b16 %v575
    %v908 = vunpack.c.h.b16 %v575
    %v909 = vunpack.c.l.b16 %v576
    %v910 = vunpack.c.h.b16 %v576
    %v911 = vunpack.c.l.b16 %v577
    %v912 = vunpack.c.h.b16 %v577
    %v913 = vunpack.c.l.b16 %v578
    %v914 = vunpack.c.h.b16 %v578
    %v915 = vunpack.c.l.b16 %v579
    %v916 = vunpack.c.h.b16 %v579
    %v917 = vunpack.c.l.b16 %v580
    %v918 = vunpack.c.h.b16 %v580
    %v919 = vunpack.c.l.b16 %v581
    %v920 = vunpack.c.h.b16 %v581
    %v921 = vunpack.c.l.b16 %v582
    %v922 = vunpack.c.h.b16 %v582
    %v923 = vunpack.c.l.b16 %v583
    %v924 = vunpack.c.h.b16 %v583
    %v925 = vunpack.c.l.b16 %v584
    %v926 = vunpack.c.h.b16 %v584
    %v927 = vunpack.c.l.b16 %v585
    %v928 = vunpack.c.h.b16 %v585
    %v929 = vunpack.c.l.b16 %v586
    %v930 = vunpack.c.h.b16 %v586
    %v931 = vunpack.c.l.b16 %v587
    %v932 = vunpack.c.h.b16 %v587
    %v933 = vunpack.c.l.b16 %v588
    %v934 = vunpack.c.h.b16 %v588
    %v935 = vunpack.c.l.b16 %v589
    %v936 = vunpack.c.h.b16 %v589
    %v937 = vunpack.c.l.b16 %v590
    %v938 = vunpack.c.h.b16 %v590
    %v939 = vunpack.c.l.b16 %v591
    %v940 = vunpack.c.h.b16 %v591
    %v941 = vunpack.c.l.b16 %v592
    %v942 = vunpack.c.h.b16 %v592
    %v943 = vunpack.c.l.b16 %v593
    %v944 = vunpack.c.h.b16 %v593
    %v945 = vunpack.c.l.b16 %v594
    %v946 = vunpack.c.h.b16 %v594
    %v947 = vunpack.c.l.b16 %v595
    %v948 = vunpack.c.h.b16 %v595
    %v949 = vunpack.c.l.b16 %v596
    %v950 = vunpack.c.h.b16 %v596
    %v951 = vunpack.c.l.b16 %v597
    %v952 = vunpack.c.h.b16 %v597
    %v953 = vunpack.c.l.b16 %v598
    %v954 = vunpack.c.h.b16 %v598
    %v955 = vunpack.c.l.b16 %v599
    %v956 = vunpack.c.h.b16 %v599
    %v957 = vunpack.c.l.b16 %v600
    %v958 = vunpack.c.h.b16 %v600
    %v959 = vunpack.c.l.b16 %v601
    %v960 = vunpack.c.h.b16 %v601
    %v961 = vunpack.c.l.b16 %v602
    %v962 = vunpack.c.h.b16 %v602
    %v963 = vunpack.c.l.b16 %v603
    %v964 = vunpack.c.h.b16 %v603
    %v965 = vunpack.c.l.b16 %v604
    %v966 = vunpack.c.h.b16 %v604
    %v967 = vunpack.c.l.b16 %v605
    %v968 = vunpack.c.h.b16 %v605
    %v969 = vunpack.c.l.b16 %v606
    %v970 = vunpack.c.h.b16 %v606
    %v971 = vunpack.c.l.b16 %v607
    %v972 = vunpack.c.h.b16 %v607
    %v973 = vunpack.c.l.b16 %v608
    %v974 = vunpack.c.h.b16 %v608
    %v975 = vunpack.c.l.b16 %v609
    %v976 = vunpack.c.h.b16 %v609
    %v977 = vunpack.c.l.b16 %v610
    %v978 = vunpack.c.h.b16 %v610
    %v979 = vunpack.c.l.b16 %v611
    %v980 = vunpack.c.h.b16 %v611
    %v981 = vunpack.c.l.b16 %v612
    %v982 = vunpack.c.h.b16 %v612
    %v983 = vunpack.c.l.b16 %v613
    %v984 = vunpack.c.h.b16 %v613
    %v985 = vunpack.c.l.b16 %v614
    %v986 = vunpack.c.h.b16 %v614
    %v987 = vunpack.c.l.b16 %v615
    %v988 = vunpack.c.h.b16 %v615
    %v989 = vunpack.c.l.b16 %v616
    %v990 = vunpack.c.h.b16 %v616
    %v991 = vunpack.c.l.b16 %v617
    %v992 = vunpack.c.h.b16 %v617
    %v993 = vunpack.c.l.b16 %v618
    %v994 = vunpack.c.h.b16 %v618
    %v995 = vunpack.c.l.b16 %v619
    %v996 = vunpack.c.h.b16 %v619
    %v997 = vunpack.c.l.b16 %v620
    %v998 = vunpack.c.h.b16 %v620
    %v999 = vunpack.c.l.b16 %v621
    %v1000 = vunpack.c.h.b16 %v621
    %v1001 = vunpack.c.l.b16 %v622
    %v1002 = vunpack.c.h.b16 %v622
    %v1003 = vunpack.c.l.b16 %v623
    %v1004 = vunpack.c.h.b16 %v623
    %v1005 = vunpack.c.l.b16 %v624
    %v1006 = vunpack.c.h.b16 %v624
    %v1007 = vunpack.c.l.b16 %v625
    %v1008 = vunpack.c.h.b16 %v625
    %v1009 = vunpack.c.l.b16 %v626
    %v1010 = vunpack.c.h.b16 %v626
    %v1011 = vunpack.c.l.b16 %v627
    %v1012 = vunpack.c.h.b16 %v627
    %v1013 = vunpack.c.l.b16 %v628
    %v1014 = vunpack.c.h.b16 %v628
    %v1015 = vunpack.c.l.b16 %v629
    %v1016 = vunpack.c.h.b16 %v629
    %v1017 = vunpack.c.l.b16 %v630
    %v1018 = vunpack.c.h.b16 %v630
    %v1019 = vunpack.c.l.b16 %v631
    %v1020 = vunpack.c.h.b16 %v631
    %v1021 = vunpack.c.l.b16 %v632
    %v1022 = vunpack.c.h.b16 %v632
    %v1023 = vunpack.c.l.b16 %v633
    %v1024 = vunpack.c.h.b16 %v633
    %v1025 = vunpack.c.l.b16 %v634
    %v1026 = vunpack.c.h.b16 %v634
    %v1027 = vunpack.c.l.b16 %v635
    %v1028 = vunpack.c.h.b16 %v635
    %v1029 = vunpack.c.l.b16 %v636
    %v1030 = vunpack.c.h.b16 %v636
    %v1031 = vunpack.c.l.b16 %v637
    %v1032 = vunpack.c.h.b16 %v637
    %v1033 = vunpack.c.l.b16 %v638
    %v1034 = vunpack.c.h.b16 %v638
    %v1035 = vunpack.c.l.b16 %v639
    %v1036 = vunpack.c.h.b16 %v639
    %v1037 = vunpack.c.l.b16 %v640
    %v1038 = vunpack.c.h.b16 %v640
    %v1039 = vunpack.c.l.b16 %v641
    %v1040 = vunpack.c.h.b16 %v641
    %v1041 = vunpack.c.l.b16 %v642
    %v1042 = vunpack.c.h.b16 %v642
    %v1043 = vunpack.c.l.b16 %v643
    %v1044 = vunpack.c.h.b16 %v643
    %v1045 = vunpack.c.l.b16 %v644
    %v1046 = vunpack.c.h.b16 %v644
    %v1047 = vunpack.c.l.b16 %v645
    %v1048 = vunpack.c.h.b16 %v645
    %v1049 = vunpack.c.l.b16 %v646
    %v1050 = vunpack.c.h.b16 %v646
    %v1051 = vunpack.c.l.b16 %v647
    %v1052 = vunpack.c.h.b16 %v647
    %v1053 = vunpack.c.l.b16 %v648
    %v1054 = vunpack.c.h.b16 %v648
    %v1055 = vpack.c.b16 %v803, %v799
    %v1056 = vpack.c.b16 %v804, %v800
    %v1057 = vpack.c.b16 %v805, %v801
    %v1058 = vpack.c.b16 %v806, %v802
    %v1059 = vpack.c.b16 %v811, %v807
    %v1060 = vpack.c.b16 %v812, %v808
    %v1061 = vpack.c.b16 %v813, %v809
    %v1062 = vpack.c.b16 %v814, %v810
    %v1063 = vpack.c.b16 %v819, %v815
    %v1064 = vpack.c.b16 %v820, %v816
    %v1065 = vpack.c.b16 %v821, %v817
    %v1066 = vpack.c.b16 %v822, %v818
    %v1067 = vpack.c.b16 %v827, %v823
    %v1068 = vpack.c.b16 %v828, %v824
    %v1069 = vpack.c.b16 %v829, %v825
    %v1070 = vpack.c.b16 %v830, %v826
    %v1071 = vpack.c.b16 %v835, %v831
    %v1072 = vpack.c.b16 %v836, %v832
    %v1073 = vpack.c.b16 %v837, %v833
    %v1074 = vpack.c.b16 %v838, %v834
    %v1075 = vpack.c.b16 %v843, %v839
    %v1076 = vpack.c.b16 %v844, %v840
    %v1077 = vpack.c.b16 %v845, %v841
    %v1078 = vpack.c.b16 %v846, %v842
    %v1079 = vpack.c.b16 %v851, %v847
    %v1080 = vpack.c.b16 %v852, %v848
    %v1081 = vpack.c.b16 %v853, %v849
    %v1082 = vpack.c.b16 %v854, %v850
    %v1083 = vpack.c.b16 %v859, %v855
    %v1084 = vpack.c.b16 %v860, %v856
    %v1085 = vpack.c.b16 %v861, %v857
    %v1086 = vpack.c.b16 %v862, %v858
    %v1087 = vpack.c.b16 %v867, %v863
    %v1088 = vpack.c.b16 %v868, %v864
    %v1089 = vpack.c.b16 %v869, %v865
    %v1090 = vpack.c.b16 %v870, %v866
    %v1091 = vpack.c.b16 %v875, %v871
    %v1092 = vpack.c.b16 %v876, %v872
    %v1093 = vpack.c.b16 %v877, %v873
    %v1094 = vpack.c.b16 %v878, %v874
    %v1095 = vpack.c.b16 %v883, %v879
    %v1096 = vpack.c.b16 %v884, %v880
    %v1097 = vpack.c.b16 %v885, %v881
    %v1098 = vpack.c.b16 %v886, %v882
    %v1099 = vpack.c.b16 %v891, %v887
    %v1100 = vpack.c.b16 %v892, %v888
    %v1101 = vpack.c.b16 %v893, %v889
    %v1102 = vpack.c.b16 %v894, %v890
    %v1103 = vpack.c.b16 %v899, %v895
    %v1104 = vpack.c.b16 %v900, %v896
    %v1105 = vpack.c.b16 %v901, %v897
    %v1106 = vpack.c.b16 %v902, %v898
    %v1107 = vpack.c.b16 %v907, %v903
    %v1108 = vpack.c.b16 %v908, %v904
    %v1109 = vpack.c.b16 %v909, %v905
    %v1110 = vpack.c.b16 %v910, %v906
    %v1111 = vpack.c.b16 %v915, %v911
    %v1112 = vpack.c.b16 %v916, %v912
    %v1113 = vpack.c.b16 %v917, %v913
    %v1114 = vpack.c.b16 %v918, %v914
    %v1115 = vpack.c.b16 %v923, %v919
    %v1116 = vpack.c.b16 %v924, %v920
    %v1117 = vpack.c.b16 %v925, %v921
    %v1118 = vpack.c.b16 %v926, %v922
    %v1119 = vpack.c.b16 %v931, %v927
    %v1120 = vpack.c.b16 %v932, %v928
    %v1121 = vpack.c.b16 %v933, %v929
    %v1122 = vpack.c.b16 %v934, %v930
    %v1123 = vpack.c.b16 %v939, %v935
    %v1124 = vpack.c.b16 %v940, %v936
    %v1125 = vpack.c.b16 %v941, %v937
    %v1126 = vpack.c.b16 %v942, %v938
    %v1127 = vpack.c.b16 %v947, %v943
    %v1128 = vpack.c.b16 %v948, %v944
    %v1129 = vpack.c.b16 %v949, %v945
    %v1130 = vpack.c.b16 %v950, %v946
    %v1131 = vpack.c.b16 %v955, %v951
    %v1132 = vpack.c.b16 %v956, %v952
    %v1133 = vpack.c.b16 %v957, %v953
    %v1134 = vpack.c.b16 %v958, %v954
    %v1135 = vpack.c.b16 %v963, %v959
    %v1136 = vpack.c.b16 %v964, %v960
    %v1137 = vpack.c.b16 %v965, %v961
    %v1138 = vpack.c.b16 %v966, %v962
    %v1139 = vpack.c.b16 %v971, %v967
    %v1140 = vpack.c.b16 %v972, %v968
    %v1141 = vpack.c.b16 %v973, %v969
    %v1142 = vpack.c.b16 %v974, %v970
    %v1143 = vpack.c.b16 %v979, %v975
    %v1144 = vpack.c.b16 %v980, %v976
    %v1145 = vpack.c.b16 %v981, %v977
    %v1146 = vpack.c.b16 %v982, %v978
    %v1147 = vpack.c.b16 %v987, %v983
    %v1148 = vpack.c.b16 %v988, %v984
    %v1149 = vpack.c.b16 %v989, %v985
    %v1150 = vpack.c.b16 %v990, %v986
    %v1151 = vpack.c.b16 %v995, %v991
    %v1152 = vpack.c.b16 %v996, %v992
    %v1153 = vpack.c.b16 %v997, %v993
    %v1154 = vpack.c.b16 %v998, %v994
    %v1155 = vpack.c.b16 %v1003, %v999
    %v1156 = vpack.c.b16 %v1004, %v1000
    %v1157 = vpack.c.b16 %v1005, %v1001
    %v1158 = vpack.c.b16 %v1006, %v1002
    %v1159 = vpack.c.b16 %v1011, %v1007
    %v1160 = vpack.c.b16 %v1012, %v1008
    %v1161 = vpack.c.b16 %v1013, %v1009
    %v1162 = vpack.c.b16 %v1014, %v1010
    %v1163 = vpack.c.b16 %v1019, %v1015
    %v1164 = vpack.c.b16 %v1020, %v1016
    %v1165 = vpack.c.b16 %v1021, %v1017
    %v1166 = vpack.c.b16 %v1022, %v1018
    %v1167 = vpack.c.b16 %v1027, %v1023
    %v1168 = vpack.c.b16 %v1028, %v1024
    %v1169 = vpack.c.b16 %v1029, %v1025
    %v1170 = vpack.c.b16 %v1030, %v1026
    %v1171 = vpack.c.b16 %v1035, %v1031
    %v1172 = vpack.c.b16 %v1036, %v1032
    %v1173 = vpack.c.b16 %v1037, %v1033
    %v1174 = vpack.c.b16 %v1038, %v1034
    %v1175 = vpack.c.b16 %v1043, %v1039
    %v1176 = vpack.c.b16 %v1044, %v1040
    %v1177 = vpack.c.b16 %v1045, %v1041
    %v1178 = vpack.c.b16 %v1046, %v1042
    %v1179 = vpack.c.b16 %v1051, %v1047
    %v1180 = vpack.c.b16 %v1052, %v1048
    %v1181 = vpack.c.b16 %v1053, %v1049
    %v1182 = vpack.c.b16 %v1054, %v1050
    %1311 = vmatprep.subr.bf16.mxu0 %v1056
    %1312 = vmatpush1.bf16.msra.mxu0 %v1055
    %1313 = vmatprep.subr.bf16.mxu0 %v1060
    %1314 = vmatpush1.bf16.msra.mxu0 %v1059
    %1315 = vmatprep.subr.bf16.mxu0 %v1064
    %1316 = vmatpush1.bf16.msra.mxu0 %v1063
    %1317 = vmatprep.subr.bf16.mxu0 %v1068
    %1318 = vmatpush1.bf16.msra.mxu0 %v1067
    %1319 = vmatprep.subr.bf16.mxu0 %v1072
    %1320 = vmatpush1.bf16.msra.mxu0 %v1071
    %1321 = vmatprep.subr.bf16.mxu0 %v1076
    %1322 = vmatpush1.bf16.msra.mxu0 %v1075
    %1323 = vmatprep.subr.bf16.mxu0 %v1080
    %1324 = vmatpush1.bf16.msra.mxu0 %v1079
    %1325 = vmatprep.subr.bf16.mxu0 %v1084
    %1326 = vmatpush1.bf16.msra.mxu0 %v1083
    %1327 = vmatprep.subr.bf16.mxu0 %v1088
    %1328 = vmatpush1.bf16.msra.mxu0 %v1087
    %1329 = vmatprep.subr.bf16.mxu0 %v1092
    %1330 = vmatpush1.bf16.msra.mxu0 %v1091
    %1331 = vmatprep.subr.bf16.mxu0 %v1096
    %1332 = vmatpush1.bf16.msra.mxu0 %v1095
    %1333 = vmatprep.subr.bf16.mxu0 %v1100
    %1334 = vmatpush1.bf16.msra.mxu0 %v1099
    %1335 = vmatprep.subr.bf16.mxu0 %v1104
    %1336 = vmatpush1.bf16.msra.mxu0 %v1103
    %1337 = vmatprep.subr.bf16.mxu0 %v1108
    %1338 = vmatpush1.bf16.msra.mxu0 %v1107
    %1339 = vmatprep.subr.bf16.mxu0 %v1112
    %1340 = vmatpush1.bf16.msra.mxu0 %v1111
    %1341 = vmatprep.subr.bf16.mxu0 %v1116
    %1342 = vmatpush1.bf16.msra.mxu0 %v1115
    %1343 = vmatprep.mubr.bf16.mxu0 %v518
    %1344 = vmatmul.mubr.bf16.gmra.mrb[0].mxu0 %v517
    %v1345 = vpop.f32.mrb[0].mxu0
    %v1346 = vadd.f32 %v654, %v1345
    %v1347 = vpop.f32.mrb[0].mxu0
    %v1348 = vadd.f32 %v658, %v1347
    %v1349 = vpop.f32.mrb[0].mxu0
    %v1350 = vpop.f32.mrb[0].mxu0
    %1351 = vdwg.mxu0
    %1352 = vmatprep.subr.bf16.mxu0 %v1120
    %1353 = vmatpush1.bf16.msra.mxu0 %v1119
    %1354 = vmatprep.subr.bf16.mxu0 %v1124
    %1355 = vmatpush1.bf16.msra.mxu0 %v1123
    %1356 = vmatprep.subr.bf16.mxu0 %v1128
    %1357 = vmatpush1.bf16.msra.mxu0 %v1127
    %1358 = vmatprep.subr.bf16.mxu0 %v1132
    %1359 = vmatpush1.bf16.msra.mxu0 %v1131
    %1360 = vmatprep.subr.bf16.mxu0 %v1136
    %1361 = vmatpush1.bf16.msra.mxu0 %v1135
    %1362 = vmatprep.subr.bf16.mxu0 %v1140
    %1363 = vmatpush1.bf16.msra.mxu0 %v1139
    %1364 = vmatprep.subr.bf16.mxu0 %v1144
    %1365 = vmatpush1.bf16.msra.mxu0 %v1143
    %1366 = vmatprep.subr.bf16.mxu0 %v1148
    %1367 = vmatpush1.bf16.msra.mxu0 %v1147
    %1368 = vmatprep.subr.bf16.mxu0 %v1152
    %1369 = vmatpush1.bf16.msra.mxu0 %v1151
    %1370 = vmatprep.subr.bf16.mxu0 %v1156
    %1371 = vmatpush1.bf16.msra.mxu0 %v1155
    %1372 = vmatprep.subr.bf16.mxu0 %v1160
    %1373 = vmatpush1.bf16.msra.mxu0 %v1159
    %1374 = vmatprep.subr.bf16.mxu0 %v1164
    %1375 = vmatpush1.bf16.msra.mxu0 %v1163
    %1376 = vmatprep.subr.bf16.mxu0 %v1168
    %1377 = vmatpush1.bf16.msra.mxu0 %v1167
    %1378 = vmatprep.subr.bf16.mxu0 %v1172
    %1379 = vmatpush1.bf16.msra.mxu0 %v1171
    %1380 = vmatprep.subr.bf16.mxu0 %v1176
    %1381 = vmatpush1.bf16.msra.mxu0 %v1175
    %1382 = vmatprep.subr.bf16.mxu0 %v1180
    %1383 = vmatpush1.bf16.msra.mxu0 %v1179
    %1384 = vmatprep.mubr.bf16.mxu0 %v520
    %1385 = vmatmul.mubr.bf16.gmra.mrb[0].mxu0 %v519
    %v1386 = vpop.f32.mrb[0].mxu0
    %v1387 = vadd.f32 %v1346, %v1386
    %v1388 = vpop.f32.mrb[0].mxu0
    %v1389 = vadd.f32 %v1348, %v1388
    %v1390 = vpop.f32.mrb[0].mxu0
    %v1391 = vpop.f32.mrb[0].mxu0
    %1392 = vdwg.mxu0
    %1393 = vmatprep.subr.bf16.mxu0 %v1058
    %1394 = vmatpush1.bf16.msra.mxu0 %v1057
    %1395 = vmatprep.subr.bf16.mxu0 %v1062
    %1396 = vmatpush1.bf16.msra.mxu0 %v1061
    %1397 = vmatprep.subr.bf16.mxu0 %v1066
    %1398 = vmatpush1.bf16.msra.mxu0 %v1065
    %1399 = vmatprep.subr.bf16.mxu0 %v1070
    %1400 = vmatpush1.bf16.msra.mxu0 %v1069
    %1401 = vmatprep.subr.bf16.mxu0 %v1074
    %1402 = vmatpush1.bf16.msra.mxu0 %v1073
    %1403 = vmatprep.subr.bf16.mxu0 %v1078
    %1404 = vmatpush1.bf16.msra.mxu0 %v1077
    %1405 = vmatprep.subr.bf16.mxu0 %v1082
    %1406 = vmatpush1.bf16.msra.mxu0 %v1081
    %1407 = vmatprep.subr.bf16.mxu0 %v1086
    %1408 = vmatpush1.bf16.msra.mxu0 %v1085
    %1409 = vmatprep.subr.bf16.mxu0 %v1090
    %1410 = vmatpush1.bf16.msra.mxu0 %v1089
    %1411 = vmatprep.subr.bf16.mxu0 %v1094
    %1412 = vmatpush1.bf16.msra.mxu0 %v1093
    %1413 = vmatprep.subr.bf16.mxu0 %v1098
    %1414 = vmatpush1.bf16.msra.mxu0 %v1097
    %1415 = vmatprep.subr.bf16.mxu0 %v1102
    %1416 = vmatpush1.bf16.msra.mxu0 %v1101
    %1417 = vmatprep.subr.bf16.mxu0 %v1106
    %1418 = vmatpush1.bf16.msra.mxu0 %v1105
    %1419 = vmatprep.subr.bf16.mxu0 %v1110
    %1420 = vmatpush1.bf16.msra.mxu0 %v1109
    %1421 = vmatprep.subr.bf16.mxu0 %v1114
    %1422 = vmatpush1.bf16.msra.mxu0 %v1113
    %1423 = vmatprep.subr.bf16.mxu0 %v1118
    %1424 = vmatpush1.bf16.msra.mxu0 %v1117
    %1425 = vmatprep.mubr.bf16.mxu0 %v518
    %1426 = vmatmul.mubr.bf16.gmra.mrb[0].mxu0 %v517
    %v1427 = vpop.f32.mrb[0].mxu0
    %v1428 = vadd.f32 %v662, %v1427
    %v1429 = vpop.f32.mrb[0].mxu0
    %v1430 = vadd.f32 %v666, %v1429
    %v1431 = vpop.f32.mrb[0].mxu0
    %v1432 = vpop.f32.mrb[0].mxu0
    %1433 = vdwg.mxu0
    %1434 = vmatprep.subr.bf16.mxu0 %v1122
    %1435 = vmatpush1.bf16.msra.mxu0 %v1121
    %1436 = vmatprep.subr.bf16.mxu0 %v1126
    %1437 = vmatpush1.bf16.msra.mxu0 %v1125
    %1438 = vmatprep.subr.bf16.mxu0 %v1130
    %1439 = vmatpush1.bf16.msra.mxu0 %v1129
    %1440 = vmatprep.subr.bf16.mxu0 %v1134
    %1441 = vmatpush1.bf16.msra.mxu0 %v1133
    %1442 = vmatprep.subr.bf16.mxu0 %v1138
    %1443 = vmatpush1.bf16.msra.mxu0 %v1137
    %1444 = vmatprep.subr.bf16.mxu0 %v1142
    %1445 = vmatpush1.bf16.msra.mxu0 %v1141
    %1446 = vmatprep.subr.bf16.mxu0 %v1146
    %1447 = vmatpush1.bf16.msra.mxu0 %v1145
    %1448 = vmatprep.subr.bf16.mxu0 %v1150
    %1449 = vmatpush1.bf16.msra.mxu0 %v1149
    %1450 = vmatprep.subr.bf16.mxu0 %v1154
    %1451 = vmatpush1.bf16.msra.mxu0 %v1153
    %1452 = vmatprep.subr.bf16.mxu0 %v1158
    %1453 = vmatpush1.bf16.msra.mxu0 %v1157
    %1454 = vmatprep.subr.bf16.mxu0 %v1162
    %1455 = vmatpush1.bf16.msra.mxu0 %v1161
    %1456 = vmatprep.subr.bf16.mxu0 %v1166
    %1457 = vmatpush1.bf16.msra.mxu0 %v1165
    %1458 = vmatprep.subr.bf16.mxu0 %v1170
    %1459 = vmatpush1.bf16.msra.mxu0 %v1169
    %1460 = vmatprep.subr.bf16.mxu0 %v1174
    %1461 = vmatpush1.bf16.msra.mxu0 %v1173
    %1462 = vmatprep.subr.bf16.mxu0 %v1178
    %1463 = vmatpush1.bf16.msra.mxu0 %v1177
    %1464 = vmatprep.subr.bf16.mxu0 %v1182
    %1465 = vmatpush1.bf16.msra.mxu0 %v1181
    %1466 = vmatprep.mubr.bf16.mxu0 %v520
    %1467 = vmatmul.mubr.bf16.gmra.mrb[0].mxu0 %v519
    %v1468 = vpop.f32.mrb[0].mxu0
    %v1469 = vadd.f32 %v1428, %v1468
    %v1470 = vpop.f32.mrb[0].mxu0
    %v1471 = vadd.f32 %v1430, %v1470
    %v1472 = vpop.f32.mrb[0].mxu0
    %v1473 = vpop.f32.mrb[0].mxu0
    %1474 = vdwg.mxu0
    %v1475 = vmul.f32 %v1387, 0.1
    %v1476 = vmul.f32 %v1389, 0.1
    %v1477 = vmul.f32 %v1469, 0.1
    %v1478 = vmul.f32 %v1471, 0.1
    %v1479 = vmax.f32 %v1387, %v1475
    %v1480 = vmax.f32 %v1389, %v1476
    %v1481 = vmax.f32 %v1469, %v1477
    %v1482 = vmax.f32 %v1471, %v1478
    %v1483 = vpack.c.bf16 %v1479, %v1479
    %v1484 = vpack.c.bf16 %v1480, %v1480
    %v1485 = vpack.c.bf16 %v1481, %v1481
    %v1486 = vpack.c.bf16 %v1482, %v1482
    %v1487 = vld [vmem:[#allocation7] sm:$0xff]
    %v1488 = vld [vmem:[#allocation7 + $0x8] sm:$0xff]
    %v1489 = vld [vmem:[#allocation7 + $0x10] sm:$0xff]
    %v1490 = vld [vmem:[#allocation7 + $0x18] sm:$0xff]
    %v1491 = vld [vmem:[#allocation7 + $0x20] sm:$0xff]
    %v1492 = vld [vmem:[#allocation7 + $0x28] sm:$0xff]
    %v1493 = vld [vmem:[#allocation7 + $0x30] sm:$0xff]
    %v1494 = vld [vmem:[#allocation7 + $0x38] sm:$0xff]
    %v1495 = vld [vmem:[#allocation7 + $0x40] sm:$0xff]
    %v1496 = vld [vmem:[#allocation7 + $0x48] sm:$0xff]
    %v1497 = vld [vmem:[#allocation7 + $0x50] sm:$0xff]
    %v1498 = vld [vmem:[#allocation7 + $0x58] sm:$0xff]
    %v1499 = vld [vmem:[#allocation7 + $0x60] sm:$0xff]
    %v1500 = vld [vmem:[#allocation7 + $0x68] sm:$0xff]
    %v1501 = vld [vmem:[#allocation7 + $0x70] sm:$0xff]
    %v1502 = vld [vmem:[#allocation7 + $0x78] sm:$0xff]
    %v1503 = vld [vmem:[#allocation7 + $0x80] sm:$0xff]
    %v1504 = vld [vmem:[#allocation7 + $0x88] sm:$0xff]
    %v1505 = vld [vmem:[#allocation7 + $0x90] sm:$0xff]
    %v1506 = vld [vmem:[#allocation7 + $0x98] sm:$0xff]
    %v1507 = vld [vmem:[#allocation7 + $0xa0] sm:$0xff]
    %v1508 = vld [vmem:[#allocation7 + $0xa8] sm:$0xff]
    %v1509 = vld [vmem:[#allocation7 + $0xb0] sm:$0xff]
    %v1510 = vld [vmem:[#allocation7 + $0xb8] sm:$0xff]
    %v1511 = vld [vmem:[#allocation7 + $0xc0] sm:$0xff]
    %v1512 = vld [vmem:[#allocation7 + $0xc8] sm:$0xff]
    %v1513 = vld [vmem:[#allocation7 + $0xd0] sm:$0xff]
    %v1514 = vld [vmem:[#allocation7 + $0xd8] sm:$0xff]
    %v1515 = vld [vmem:[#allocation7 + $0xe0] sm:$0xff]
    %v1516 = vld [vmem:[#allocation7 + $0xe8] sm:$0xff]
    %v1517 = vld [vmem:[#allocation7 + $0xf0] sm:$0xff]
    %v1518 = vld [vmem:[#allocation7 + $0xf8] sm:$0xff]
    %v1519 = vld [vmem:[#allocation7 + $0x100] sm:$0xff]
    %v1520 = vld [vmem:[#allocation7 + $0x108] sm:$0xff]
    %v1521 = vld [vmem:[#allocation7 + $0x110] sm:$0xff]
    %v1522 = vld [vmem:[#allocation7 + $0x118] sm:$0xff]
    %v1523 = vld [vmem:[#allocation7 + $0x120] sm:$0xff]
    %v1524 = vld [vmem:[#allocation7 + $0x128] sm:$0xff]
    %v1525 = vld [vmem:[#allocation7 + $0x130] sm:$0xff]
    %v1526 = vld [vmem:[#allocation7 + $0x138] sm:$0xff]
    %v1527 = vld [vmem:[#allocation7 + $0x140] sm:$0xff]
    %v1528 = vld [vmem:[#allocation7 + $0x148] sm:$0xff]
    %v1529 = vld [vmem:[#allocation7 + $0x150] sm:$0xff]
    %v1530 = vld [vmem:[#allocation7 + $0x158] sm:$0xff]
    %v1531 = vld [vmem:[#allocation7 + $0x160] sm:$0xff]
    %v1532 = vld [vmem:[#allocation7 + $0x168] sm:$0xff]
    %v1533 = vld [vmem:[#allocation7 + $0x170] sm:$0xff]
    %v1534 = vld [vmem:[#allocation7 + $0x178] sm:$0xff]
    %v1535 = vld [vmem:[#allocation7 + $0x180] sm:$0xff]
    %v1536 = vld [vmem:[#allocation7 + $0x188] sm:$0xff]
    %v1537 = vld [vmem:[#allocation7 + $0x190] sm:$0xff]
    %v1538 = vld [vmem:[#allocation7 + $0x198] sm:$0xff]
    %v1539 = vld [vmem:[#allocation7 + $0x1a0] sm:$0xff]
    %v1540 = vld [vmem:[#allocation7 + $0x1a8] sm:$0xff]
    %v1541 = vld [vmem:[#allocation7 + $0x1b0] sm:$0xff]
    %v1542 = vld [vmem:[#allocation7 + $0x1b8] sm:$0xff]
    %v1543 = vld [vmem:[#allocation7 + $0x1c0] sm:$0xff]
    %v1544 = vld [vmem:[#allocation7 + $0x1c8] sm:$0xff]
    %v1545 = vld [vmem:[#allocation7 + $0x1d0] sm:$0xff]
    %v1546 = vld [vmem:[#allocation7 + $0x1d8] sm:$0xff]
    %v1547 = vld [vmem:[#allocation7 + $0x1e0] sm:$0xff]
    %v1548 = vld [vmem:[#allocation7 + $0x1e8] sm:$0xff]
    %v1549 = vld [vmem:[#allocation7 + $0x1f0] sm:$0xff]
    %v1550 = vld [vmem:[#allocation7 + $0x1f8] sm:$0xff]
    %v1551 = vld [vmem:[%s8] sm:$0x3]
    %v1553 = vlaneseq
    %v1554 = vshrl.u32 %v1553, 7
    %v1555 = vsub.s32 0, %v1554
    %v1556 = vrot.slane %v1551, %v1555
    %v1557 = vlaneseq
    %v1558 = vshrl.u32 %v1557, 7
    %v1559 = vsub.s32 1, %v1558
    %v1560 = vrot.slane %v1551, %v1559
    %v1627 = vunpack.c.l.b16 %v1487
    %v1628 = vunpack.c.h.b16 %v1487
    %v1629 = vunpack.c.l.b16 %v1488
    %v1630 = vunpack.c.h.b16 %v1488
    %v1631 = vunpack.c.l.b16 %v1489
    %v1632 = vunpack.c.h.b16 %v1489
    %v1633 = vunpack.c.l.b16 %v1490
    %v1634 = vunpack.c.h.b16 %v1490
    %v1635 = vunpack.c.l.b16 %v1491
    %v1636 = vunpack.c.h.b16 %v1491
    %v1637 = vunpack.c.l.b16 %v1492
    %v1638 = vunpack.c.h.b16 %v1492
    %v1639 = vunpack.c.l.b16 %v1493
    %v1640 = vunpack.c.h.b16 %v1493
    %v1641 = vunpack.c.l.b16 %v1494
    %v1642 = vunpack.c.h.b16 %v1494
    %v1643 = vunpack.c.l.b16 %v1495
    %v1644 = vunpack.c.h.b16 %v1495
    %v1645 = vunpack.c.l.b16 %v1496
    %v1646 = vunpack.c.h.b16 %v1496
    %v1647 = vunpack.c.l.b16 %v1497
    %v1648 = vunpack.c.h.b16 %v1497
    %v1649 = vunpack.c.l.b16 %v1498
    %v1650 = vunpack.c.h.b16 %v1498
    %v1651 = vunpack.c.l.b16 %v1499
    %v1652 = vunpack.c.h.b16 %v1499
    %v1653 = vunpack.c.l.b16 %v1500
    %v1654 = vunpack.c.h.b16 %v1500
    %v1655 = vunpack.c.l.b16 %v1501
    %v1656 = vunpack.c.h.b16 %v1501
    %v1657 = vunpack.c.l.b16 %v1502
    %v1658 = vunpack.c.h.b16 %v1502
    %v1659 = vunpack.c.l.b16 %v1503
    %v1660 = vunpack.c.h.b16 %v1503
    %v1661 = vunpack.c.l.b16 %v1504
    %v1662 = vunpack.c.h.b16 %v1504
    %v1663 = vunpack.c.l.b16 %v1505
    %v1664 = vunpack.c.h.b16 %v1505
    %v1665 = vunpack.c.l.b16 %v1506
    %v1666 = vunpack.c.h.b16 %v1506
    %v1667 = vunpack.c.l.b16 %v1507
    %v1668 = vunpack.c.h.b16 %v1507
    %v1669 = vunpack.c.l.b16 %v1508
    %v1670 = vunpack.c.h.b16 %v1508
    %v1671 = vunpack.c.l.b16 %v1509
    %v1672 = vunpack.c.h.b16 %v1509
    %v1673 = vunpack.c.l.b16 %v1510
    %v1674 = vunpack.c.h.b16 %v1510
    %v1675 = vunpack.c.l.b16 %v1511
    %v1676 = vunpack.c.h.b16 %v1511
    %v1677 = vunpack.c.l.b16 %v1512
    %v1678 = vunpack.c.h.b16 %v1512
    %v1679 = vunpack.c.l.b16 %v1513
    %v1680 = vunpack.c.h.b16 %v1513
    %v1681 = vunpack.c.l.b16 %v1514
    %v1682 = vunpack.c.h.b16 %v1514
    %v1683 = vunpack.c.l.b16 %v1515
    %v1684 = vunpack.c.h.b16 %v1515
    %v1685 = vunpack.c.l.b16 %v1516
    %v1686 = vunpack.c.h.b16 %v1516
    %v1687 = vunpack.c.l.b16 %v1517
    %v1688 = vunpack.c.h.b16 %v1517
    %v1689 = vunpack.c.l.b16 %v1518
    %v1690 = vunpack.c.h.b16 %v1518
    %v1691 = vunpack.c.l.b16 %v1519
    %v1692 = vunpack.c.h.b16 %v1519
    %v1693 = vunpack.c.l.b16 %v1520
    %v1694 = vunpack.c.h.b16 %v1520
    %v1695 = vunpack.c.l.b16 %v1521
    %v1696 = vunpack.c.h.b16 %v1521
    %v1697 = vunpack.c.l.b16 %v1522
    %v1698 = vunpack.c.h.b16 %v1522
    %v1699 = vunpack.c.l.b16 %v1523
    %v1700 = vunpack.c.h.b16 %v1523
    %v1701 = vunpack.c.l.b16 %v1524
    %v1702 = vunpack.c.h.b16 %v1524
    %v1703 = vunpack.c.l.b16 %v1525
    %v1704 = vunpack.c.h.b16 %v1525
    %v1705 = vunpack.c.l.b16 %v1526
    %v1706 = vunpack.c.h.b16 %v1526
    %v1707 = vunpack.c.l.b16 %v1527
    %v1708 = vunpack.c.h.b16 %v1527
    %v1709 = vunpack.c.l.b16 %v1528
    %v1710 = vunpack.c.h.b16 %v1528
    %v1711 = vunpack.c.l.b16 %v1529
    %v1712 = vunpack.c.h.b16 %v1529
    %v1713 = vunpack.c.l.b16 %v1530
    %v1714 = vunpack.c.h.b16 %v1530
    %v1715 = vunpack.c.l.b16 %v1531
    %v1716 = vunpack.c.h.b16 %v1531
    %v1717 = vunpack.c.l.b16 %v1532
    %v1718 = vunpack.c.h.b16 %v1532
    %v1719 = vunpack.c.l.b16 %v1533
    %v1720 = vunpack.c.h.b16 %v1533
    %v1721 = vunpack.c.l.b16 %v1534
    %v1722 = vunpack.c.h.b16 %v1534
    %v1723 = vunpack.c.l.b16 %v1535
    %v1724 = vunpack.c.h.b16 %v1535
    %v1725 = vunpack.c.l.b16 %v1536
    %v1726 = vunpack.c.h.b16 %v1536
    %v1727 = vunpack.c.l.b16 %v1537
    %v1728 = vunpack.c.h.b16 %v1537
    %v1729 = vunpack.c.l.b16 %v1538
    %v1730 = vunpack.c.h.b16 %v1538
    %v1731 = vunpack.c.l.b16 %v1539
    %v1732 = vunpack.c.h.b16 %v1539
    %v1733 = vunpack.c.l.b16 %v1540
    %v1734 = vunpack.c.h.b16 %v1540
    %v1735 = vunpack.c.l.b16 %v1541
    %v1736 = vunpack.c.h.b16 %v1541
    %v1737 = vunpack.c.l.b16 %v1542
    %v1738 = vunpack.c.h.b16 %v1542
    %v1739 = vunpack.c.l.b16 %v1543
    %v1740 = vunpack.c.h.b16 %v1543
    %v1741 = vunpack.c.l.b16 %v1544
    %v1742 = vunpack.c.h.b16 %v1544
    %v1743 = vunpack.c.l.b16 %v1545
    %v1744 = vunpack.c.h.b16 %v1545
    %v1745 = vunpack.c.l.b16 %v1546
    %v1746 = vunpack.c.h.b16 %v1546
    %v1747 = vunpack.c.l.b16 %v1547
    %v1748 = vunpack.c.h.b16 %v1547
    %v1749 = vunpack.c.l.b16 %v1548
    %v1750 = vunpack.c.h.b16 %v1548
    %v1751 = vunpack.c.l.b16 %v1549
    %v1752 = vunpack.c.h.b16 %v1549
    %v1753 = vunpack.c.l.b16 %v1550
    %v1754 = vunpack.c.h.b16 %v1550
    %v1755 = vpack.c.b16 %v1629, %v1627
    %v1756 = vpack.c.b16 %v1630, %v1628
    %v1757 = vpack.c.b16 %v1633, %v1631
    %v1758 = vpack.c.b16 %v1634, %v1632
    %v1759 = vpack.c.b16 %v1637, %v1635
    %v1760 = vpack.c.b16 %v1638, %v1636
    %v1761 = vpack.c.b16 %v1641, %v1639
    %v1762 = vpack.c.b16 %v1642, %v1640
    %v1763 = vpack.c.b16 %v1645, %v1643
    %v1764 = vpack.c.b16 %v1646, %v1644
    %v1765 = vpack.c.b16 %v1649, %v1647
    %v1766 = vpack.c.b16 %v1650, %v1648
    %v1767 = vpack.c.b16 %v1653, %v1651
    %v1768 = vpack.c.b16 %v1654, %v1652
    %v1769 = vpack.c.b16 %v1657, %v1655
    %v1770 = vpack.c.b16 %v1658, %v1656
    %v1771 = vpack.c.b16 %v1661, %v1659
    %v1772 = vpack.c.b16 %v1662, %v1660
    %v1773 = vpack.c.b16 %v1665, %v1663
    %v1774 = vpack.c.b16 %v1666, %v1664
    %v1775 = vpack.c.b16 %v1669, %v1667
    %v1776 = vpack.c.b16 %v1670, %v1668
    %v1777 = vpack.c.b16 %v1673, %v1671
    %v1778 = vpack.c.b16 %v1674, %v1672
    %v1779 = vpack.c.b16 %v1677, %v1675
    %v1780 = vpack.c.b16 %v1678, %v1676
    %v1781 = vpack.c.b16 %v1681, %v1679
    %v1782 = vpack.c.b16 %v1682, %v1680
    %v1783 = vpack.c.b16 %v1685, %v1683
    %v1784 = vpack.c.b16 %v1686, %v1684
    %v1785 = vpack.c.b16 %v1689, %v1687
    %v1786 = vpack.c.b16 %v1690, %v1688
    %v1787 = vpack.c.b16 %v1693, %v1691
    %v1788 = vpack.c.b16 %v1694, %v1692
    %v1789 = vpack.c.b16 %v1697, %v1695
    %v1790 = vpack.c.b16 %v1698, %v1696
    %v1791 = vpack.c.b16 %v1701, %v1699
    %v1792 = vpack.c.b16 %v1702, %v1700
    %v1793 = vpack.c.b16 %v1705, %v1703
    %v1794 = vpack.c.b16 %v1706, %v1704
    %v1795 = vpack.c.b16 %v1709, %v1707
    %v1796 = vpack.c.b16 %v1710, %v1708
    %v1797 = vpack.c.b16 %v1713, %v1711
    %v1798 = vpack.c.b16 %v1714, %v1712
    %v1799 = vpack.c.b16 %v1717, %v1715
    %v1800 = vpack.c.b16 %v1718, %v1716
    %v1801 = vpack.c.b16 %v1721, %v1719
    %v1802 = vpack.c.b16 %v1722, %v1720
    %v1803 = vpack.c.b16 %v1725, %v1723
    %v1804 = vpack.c.b16 %v1726, %v1724
    %v1805 = vpack.c.b16 %v1729, %v1727
    %v1806 = vpack.c.b16 %v1730, %v1728
    %v1807 = vpack.c.b16 %v1733, %v1731
    %v1808 = vpack.c.b16 %v1734, %v1732
    %v1809 = vpack.c.b16 %v1737, %v1735
    %v1810 = vpack.c.b16 %v1738, %v1736
    %v1811 = vpack.c.b16 %v1741, %v1739
    %v1812 = vpack.c.b16 %v1742, %v1740
    %v1813 = vpack.c.b16 %v1745, %v1743
    %v1814 = vpack.c.b16 %v1746, %v1744
    %v1815 = vpack.c.b16 %v1749, %v1747
    %v1816 = vpack.c.b16 %v1750, %v1748
    %v1817 = vpack.c.b16 %v1753, %v1751
    %v1818 = vpack.c.b16 %v1754, %v1752
    %1883 = vmatprep.subr.bf16.mxu0 %v1756
    %1884 = vmatpush1.bf16.msra.mxu0 %v1755
    %1885 = vmatprep.subr.bf16.mxu0 %v1758
    %1886 = vmatpush1.bf16.msra.mxu0 %v1757
    %1887 = vmatprep.subr.bf16.mxu0 %v1760
    %1888 = vmatpush1.bf16.msra.mxu0 %v1759
    %1889 = vmatprep.subr.bf16.mxu0 %v1762
    %1890 = vmatpush1.bf16.msra.mxu0 %v1761
    %1891 = vmatprep.subr.bf16.mxu0 %v1764
    %1892 = vmatpush1.bf16.msra.mxu0 %v1763
    %1893 = vmatprep.subr.bf16.mxu0 %v1766
    %1894 = vmatpush1.bf16.msra.mxu0 %v1765
    %1895 = vmatprep.subr.bf16.mxu0 %v1768
    %1896 = vmatpush1.bf16.msra.mxu0 %v1767
    %1897 = vmatprep.subr.bf16.mxu0 %v1770
    %1898 = vmatpush1.bf16.msra.mxu0 %v1769
    %1899 = vmatprep.subr.bf16.mxu0 %v1772
    %1900 = vmatpush1.bf16.msra.mxu0 %v1771
    %1901 = vmatprep.subr.bf16.mxu0 %v1774
    %1902 = vmatpush1.bf16.msra.mxu0 %v1773
    %1903 = vmatprep.subr.bf16.mxu0 %v1776
    %1904 = vmatpush1.bf16.msra.mxu0 %v1775
    %1905 = vmatprep.subr.bf16.mxu0 %v1778
    %1906 = vmatpush1.bf16.msra.mxu0 %v1777
    %1907 = vmatprep.subr.bf16.mxu0 %v1780
    %1908 = vmatpush1.bf16.msra.mxu0 %v1779
    %1909 = vmatprep.subr.bf16.mxu0 %v1782
    %1910 = vmatpush1.bf16.msra.mxu0 %v1781
    %1911 = vmatprep.subr.bf16.mxu0 %v1784
    %1912 = vmatpush1.bf16.msra.mxu0 %v1783
    %1913 = vmatprep.subr.bf16.mxu0 %v1786
    %1914 = vmatpush1.bf16.msra.mxu0 %v1785
    %1915 = vmatprep.mubr.bf16.mxu0 %v1484
    %1916 = vmatmul.mubr.bf16.gmra.mrb[0].mxu0 %v1483
    %v1917 = vpop.f32.mrb[0].mxu0
    %v1918 = vadd.f32 %v1556, %v1917
    %v1919 = vpop.f32.mrb[0].mxu0
    %v1920 = vadd.f32 %v1560, %v1919
    %v1921 = vpop.f32.mrb[0].mxu0
    %v1922 = vpop.f32.mrb[0].mxu0
    %1923 = vdwg.mxu0
    %1924 = vmatprep.subr.bf16.mxu0 %v1788
    %1925 = vmatpush1.bf16.msra.mxu0 %v1787
    %1926 = vmatprep.subr.bf16.mxu0 %v1790
    %1927 = vmatpush1.bf16.msra.mxu0 %v1789
    %1928 = vmatprep.subr.bf16.mxu0 %v1792
    %1929 = vmatpush1.bf16.msra.mxu0 %v1791
    %1930 = vmatprep.subr.bf16.mxu0 %v1794
    %1931 = vmatpush1.bf16.msra.mxu0 %v1793
    %1932 = vmatprep.subr.bf16.mxu0 %v1796
    %1933 = vmatpush1.bf16.msra.mxu0 %v1795
    %1934 = vmatprep.subr.bf16.mxu0 %v1798
    %1935 = vmatpush1.bf16.msra.mxu0 %v1797
    %1936 = vmatprep.subr.bf16.mxu0 %v1800
    %1937 = vmatpush1.bf16.msra.mxu0 %v1799
    %1938 = vmatprep.subr.bf16.mxu0 %v1802
    %1939 = vmatpush1.bf16.msra.mxu0 %v1801
    %1940 = vmatprep.subr.bf16.mxu0 %v1804
    %1941 = vmatpush1.bf16.msra.mxu0 %v1803
    %1942 = vmatprep.subr.bf16.mxu0 %v1806
    %1943 = vmatpush1.bf16.msra.mxu0 %v1805
    %1944 = vmatprep.subr.bf16.mxu0 %v1808
    %1945 = vmatpush1.bf16.msra.mxu0 %v1807
    %1946 = vmatprep.subr.bf16.mxu0 %v1810
    %1947 = vmatpush1.bf16.msra.mxu0 %v1809
    %1948 = vmatprep.subr.bf16.mxu0 %v1812
    %1949 = vmatpush1.bf16.msra.mxu0 %v1811
    %1950 = vmatprep.subr.bf16.mxu0 %v1814
    %1951 = vmatpush1.bf16.msra.mxu0 %v1813
    %1952 = vmatprep.subr.bf16.mxu0 %v1816
    %1953 = vmatpush1.bf16.msra.mxu0 %v1815
    %1954 = vmatprep.subr.bf16.mxu0 %v1818
    %1955 = vmatpush1.bf16.msra.mxu0 %v1817
    %1956 = vmatprep.mubr.bf16.mxu0 %v1486
    %1957 = vmatmul.mubr.bf16.gmra.mrb[0].mxu0 %v1485
    %v1958 = vpop.f32.mrb[0].mxu0
    %v1959 = vadd.f32 %v1918, %v1958
    %v1960 = vpop.f32.mrb[0].mxu0
    %v1961 = vadd.f32 %v1920, %v1960
    %v1962 = vpop.f32.mrb[0].mxu0
    %v1963 = vpop.f32.mrb[0].mxu0
    %1964 = vdwg.mxu0
    %v1965 = vmul.f32 %v1959, 0.1
    %v1966 = vmul.f32 %v1961, 0.1
    %v1967 = vmax.f32 %v1959, %v1965
    %v1968 = vmax.f32 %v1961, %v1966
    %v1969 = vpack.c.bf16 %v1967, %v1967
    %v1970 = vpack.c.bf16 %v1968, %v1968
    %v1971 = vld [vmem:[#allocation8] sm:$0xf]
    %v1972 = vld [vmem:[#allocation8 + $0x4] sm:$0xf]
    %v1973 = vld [vmem:[#allocation8 + $0x8] sm:$0xf]
    %v1974 = vld [vmem:[#allocation8 + $0xc] sm:$0xf]
    %v1975 = vld [vmem:[#allocation8 + $0x10] sm:$0xf]
    %v1976 = vld [vmem:[#allocation8 + $0x14] sm:$0xf]
    %v1977 = vld [vmem:[#allocation8 + $0x18] sm:$0xf]
    %v1978 = vld [vmem:[#allocation8 + $0x1c] sm:$0xf]
    %v1979 = vld [vmem:[#allocation8 + $0x20] sm:$0xf]
    %v1980 = vld [vmem:[#allocation8 + $0x24] sm:$0xf]
    %v1981 = vld [vmem:[#allocation8 + $0x28] sm:$0xf]
    %v1982 = vld [vmem:[#allocation8 + $0x2c] sm:$0xf]
    %v1983 = vld [vmem:[#allocation8 + $0x30] sm:$0xf]
    %v1984 = vld [vmem:[#allocation8 + $0x34] sm:$0xf]
    %v1985 = vld [vmem:[#allocation8 + $0x38] sm:$0xf]
    %v1986 = vld [vmem:[#allocation8 + $0x3c] sm:$0xf]
    %v1987 = vld [vmem:[#allocation8 + $0x40] sm:$0xf]
    %v1988 = vld [vmem:[#allocation8 + $0x44] sm:$0xf]
    %v1989 = vld [vmem:[#allocation8 + $0x48] sm:$0xf]
    %v1990 = vld [vmem:[#allocation8 + $0x4c] sm:$0xf]
    %v1991 = vld [vmem:[#allocation8 + $0x50] sm:$0xf]
    %v1992 = vld [vmem:[#allocation8 + $0x54] sm:$0xf]
    %v1993 = vld [vmem:[#allocation8 + $0x58] sm:$0xf]
    %v1994 = vld [vmem:[#allocation8 + $0x5c] sm:$0xf]
    %v1995 = vld [vmem:[#allocation8 + $0x60] sm:$0xf]
    %v1996 = vld [vmem:[#allocation8 + $0x64] sm:$0xf]
    %v1997 = vld [vmem:[#allocation8 + $0x68] sm:$0xf]
    %v1998 = vld [vmem:[#allocation8 + $0x6c] sm:$0xf]
    %v1999 = vld [vmem:[#allocation8 + $0x70] sm:$0xf]
    %v2000 = vld [vmem:[#allocation8 + $0x74] sm:$0xf]
    %v2001 = vld [vmem:[#allocation8 + $0x78] sm:$0xf]
    %v2002 = vld [vmem:[#allocation8 + $0x7c] sm:$0xf]
    %v2003 = vld [vmem:[%s10] sm:$0x1]
    %v2005 = vlaneseq
    %v2006 = vshrl.u32 %v2005, 7
    %v2007 = vsub.s32 0, %v2006
    %v2008 = vrot.slane %v2003, %v2007
    %v2042 = vunpack.c.l.b16 %v1971
    %v2043 = vunpack.c.l.b16 %v1972
    %v2044 = vunpack.c.l.b16 %v1973
    %v2045 = vunpack.c.l.b16 %v1974
    %v2046 = vunpack.c.l.b16 %v1975
    %v2047 = vunpack.c.l.b16 %v1976
    %v2048 = vunpack.c.l.b16 %v1977
    %v2049 = vunpack.c.l.b16 %v1978
    %v2050 = vunpack.c.l.b16 %v1979
    %v2051 = vunpack.c.l.b16 %v1980
    %v2052 = vunpack.c.l.b16 %v1981
    %v2053 = vunpack.c.l.b16 %v1982
    %v2054 = vunpack.c.l.b16 %v1983
    %v2055 = vunpack.c.l.b16 %v1984
    %v2056 = vunpack.c.l.b16 %v1985
    %v2057 = vunpack.c.l.b16 %v1986
    %v2058 = vunpack.c.l.b16 %v1987
    %v2059 = vunpack.c.l.b16 %v1988
    %v2060 = vunpack.c.l.b16 %v1989
    %v2061 = vunpack.c.l.b16 %v1990
    %v2062 = vunpack.c.l.b16 %v1991
    %v2063 = vunpack.c.l.b16 %v1992
    %v2064 = vunpack.c.l.b16 %v1993
    %v2065 = vunpack.c.l.b16 %v1994
    %v2066 = vunpack.c.l.b16 %v1995
    %v2067 = vunpack.c.l.b16 %v1996
    %v2068 = vunpack.c.l.b16 %v1997
    %v2069 = vunpack.c.l.b16 %v1998
    %v2070 = vunpack.c.l.b16 %v1999
    %v2071 = vunpack.c.l.b16 %v2000
    %v2072 = vunpack.c.l.b16 %v2001
    %v2073 = vunpack.c.l.b16 %v2002
    %v2074 = vpack.c.b16 %v2043, %v2042
    %v2075 = vpack.c.b16 %v2045, %v2044
    %v2076 = vpack.c.b16 %v2047, %v2046
    %v2077 = vpack.c.b16 %v2049, %v2048
    %v2078 = vpack.c.b16 %v2051, %v2050
    %v2079 = vpack.c.b16 %v2053, %v2052
    %v2080 = vpack.c.b16 %v2055, %v2054
    %v2081 = vpack.c.b16 %v2057, %v2056
    %v2082 = vpack.c.b16 %v2059, %v2058
    %v2083 = vpack.c.b16 %v2061, %v2060
    %v2084 = vpack.c.b16 %v2063, %v2062
    %v2085 = vpack.c.b16 %v2065, %v2064
    %v2086 = vpack.c.b16 %v2067, %v2066
    %v2087 = vpack.c.b16 %v2069, %v2068
    %v2088 = vpack.c.b16 %v2071, %v2070
    %v2089 = vpack.c.b16 %v2073, %v2072
    %2106 = vmatprep.subr.bf16.mxu0 0
    %2107 = vmatpush1.bf16.msra.mxu0 %v2074
    %2108 = vmatprep.subr.bf16.mxu0 0
    %2109 = vmatpush1.bf16.msra.mxu0 %v2075
    %2110 = vmatprep.subr.bf16.mxu0 0
    %2111 = vmatpush1.bf16.msra.mxu0 %v2076
    %2112 = vmatprep.subr.bf16.mxu0 0
    %2113 = vmatpush1.bf16.msra.mxu0 %v2077
    %2114 = vmatprep.subr.bf16.mxu0 0
    %2115 = vmatpush1.bf16.msra.mxu0 %v2078
    %2116 = vmatprep.subr.bf16.mxu0 0
    %2117 = vmatpush1.bf16.msra.mxu0 %v2079
    %2118 = vmatprep.subr.bf16.mxu0 0
    %2119 = vmatpush1.bf16.msra.mxu0 %v2080
    %2120 = vmatprep.subr.bf16.mxu0 0
    %2121 = vmatpush1.bf16.msra.mxu0 %v2081
    %2122 = vmatprep.subr.bf16.mxu0 0
    %2123 = vmatpush1.bf16.msra.mxu0 %v2082
    %2124 = vmatprep.subr.bf16.mxu0 0
    %2125 = vmatpush1.bf16.msra.mxu0 %v2083
    %2126 = vmatprep.subr.bf16.mxu0 0
    %2127 = vmatpush1.bf16.msra.mxu0 %v2084
    %2128 = vmatprep.subr.bf16.mxu0 0
    %2129 = vmatpush1.bf16.msra.mxu0 %v2085
    %2130 = vmatprep.subr.bf16.mxu0 0
    %2131 = vmatpush1.bf16.msra.mxu0 %v2086
    %2132 = vmatprep.subr.bf16.mxu0 0
    %2133 = vmatpush1.bf16.msra.mxu0 %v2087
    %2134 = vmatprep.subr.bf16.mxu0 0
    %2135 = vmatpush1.bf16.msra.mxu0 %v2088
    %2136 = vmatprep.subr.bf16.mxu0 0
    %2137 = vmatpush1.bf16.msra.mxu0 %v2089
    %2138 = vmatprep.mubr.bf16.mxu0 %v1970
    %2139 = vmatmul.mubr.bf16.gmra.mrb[0].mxu0 %v1969
    %v2140 = vpop.f32.mrb[0].mxu0
    %v2141 = vadd.f32 %v2008, %v2140
    %v2142 = vpop.f32.mrb[0].mxu0
    %v2143 = vpop.f32.mrb[0].mxu0
    %v2144 = vpop.f32.mrb[0].mxu0
    %2145 = vdwg.mxu0
    %2146 = vxpose.xlu0.b32.start [1/16] %v2141, 128
    %2147 = vxpose.xlu0.b32.cont [2/16] 0.0, 128
    %2148 = vxpose.xlu0.b32.cont [3/16] 0.0, 128
    %2149 = vxpose.xlu0.b32.cont [4/16] 0.0, 128
    %2150 = vxpose.xlu0.b32.cont [5/16] 0.0, 128
    %2151 = vxpose.xlu0.b32.cont [6/16] 0.0, 128
    %2152 = vxpose.xlu0.b32.cont [7/16] 0.0, 128
    %2153 = vxpose.xlu0.b32.cont [8/16] 0.0, 128
    %2154 = vxpose.xlu0.b32.cont [9/16] 0.0, 128
    %2155 = vxpose.xlu0.b32.cont [10/16] 0.0, 128
    %2156 = vxpose.xlu0.b32.cont [11/16] 0.0, 128
    %2157 = vxpose.xlu0.b32.cont [12/16] 0.0, 128
    %2158 = vxpose.xlu0.b32.cont [13/16] 0.0, 128
    %2159 = vxpose.xlu0.b32.cont [14/16] 0.0, 128
    %2160 = vxpose.xlu0.b32.cont [15/16] 0.0, 128
    %2161 = vxpose.xlu0.b32.end [16/16] 0.0, 128
    %v2162 = vpop.trf.xlu0
    %v2163 = vpop.trf.xlu0
    %v2164 = vpop.trf.xlu0
    %v2165 = vpop.trf.xlu0
    %v2166 = vpop.trf.xlu0
    %v2167 = vpop.trf.xlu0
    %v2168 = vpop.trf.xlu0
    %v2169 = vpop.trf.xlu0
    %v2170 = vpop.trf.xlu0
    %v2171 = vpop.trf.xlu0
    %v2172 = vpop.trf.xlu0
    %v2173 = vpop.trf.xlu0
    %v2174 = vpop.trf.xlu0
    %v2175 = vpop.trf.xlu0
    %v2176 = vpop.trf.xlu0
    %v2177 = vpop.trf.xlu0
    %vm2178 = vcmask 57344
    %2179 = vst.msk [vmem:[#allocation10] sm:$0x1] %vm2178, %v2162
    // Predicated region
    $region62: #{discriminator_gmm_forward.1} parent=1 // pred_check
      _
    $region63: #{discriminator_gmm_forward.1} parent=1 // pred_check_branch
      %2181 = sbr.rel (0) target = $region65
    $region64: #{discriminator_gmm_forward.1} parent=1 // pred_region
      %s2183 = ssub.s32 16, 16
      %2184 = vsyncadd [#allocation4], %s2183
      %s2186 = sshll.u32 [#allocation10], 4
      %s2187 = int_to_ptr.vmem [resolvable:$true] %s2186
      %2189 = dma.vmem_to_hbm [thread:$0]  %s2187, 16, %s11, [#allocation4]
    $region65: #{discriminator_gmm_forward.1} parent=1 // pred_fallthru
      _
    // Predicated region
    $region66: #{discriminator_gmm_forward.1} parent=1 // pred_check
      _
    $region67: #{discriminator_gmm_forward.1} parent=1 // pred_check_branch
      %2191 = sbr.rel (0) target = $region69
    $region68: #{discriminator_gmm_forward.1} parent=1 // pred_region
      %2192 = dma.done [#allocation4], 16
    $region69: #{discriminator_gmm_forward.1} parent=1 // pred_fallthru
      _
    %2193 = vsyncpa [#allocation3], 1
    %2194 = vsyncpa [#allocation6], 1
    %2195 = vsyncpa [#allocation9], 1
    %2196 = vsyncpa [#allocation4], 1

</llo_original>
